<compile_context>
chip_gen: v7x
topology: tpu7x:2x2x1
jax: 0.10.0
libtpu: 0.0.40
codegen_flags: <defaults>
</compile_context>

<pallas_src>
import math
import jax
import jax.numpy as jnp
from jax import lax
from jax.experimental import pallas as pl
from jax.experimental.pallas import tpu as pltpu

EMBED_DIM = 32
NUM_HEADS = 4
MLP_DIM = 64
HEAD_DIM = EMBED_DIM // NUM_HEADS
LN_EPS = 1e-5

# ---- packed parameter slab layout (single DMA) -------------------------------
#   rows   0: 32  -> w_in.T   (E, 3E)  cols 0:96   (Q cols pre-scaled by 1/sqrt(Dh))
#   rows  32: 64  -> w1.T     (E, M)   cols 0:64
#   rows  64:128  -> w2.T     (M, E)   cols 0:32
#   rows 128:160  -> w_out.T  (E, E)   cols 0:32   (head-major Dh-row blocks)
#   rows 160:170  -> 1-D params, one per row (see ROW_* below)
W_IN_R0 = 0
W1_R0 = 32
W2_R0 = 64
WOUT_R0 = 128
VEC_R0 = 160
ROW_LN1_G, ROW_LN1_B = VEC_R0 + 0, VEC_R0 + 1
ROW_LNA_G, ROW_LNA_B = VEC_R0 + 2, VEC_R0 + 3
ROW_LN2_G, ROW_LN2_B = VEC_R0 + 4, VEC_R0 + 5
ROW_B_IN = VEC_R0 + 6      # cols 0:96  (Q part pre-scaled)
ROW_B1 = VEC_R0 + 7        # cols 0:64
ROW_B_OUT = VEC_R0 + 8     # cols 0:32
ROW_B2 = VEC_R0 + 9        # cols 0:32
SLAB_ROWS = 176            # 170 rounded up to a sublane multiple
SLAB_COLS = 96             # = 3 * EMBED_DIM


def _ln(h, g, b):
    mu = jnp.mean(h, axis=-1, keepdims=True)
    c = h - mu
    var = jnp.mean(c * c, axis=-1, keepdims=True)
    return c * lax.rsqrt(var + LN_EPS) * g + b


def _encoder_kernel(x_ref, p_ref, o_ref):
    x = x_ref[...]                                    # (S, E)
    E = EMBED_DIM

    def vec(row, width):
        return p_ref[row:row + 1, 0:width]            # (1, width), static slice

    # --- attention prologue: encoder LN1, then the attention block's own LN
    h = _ln(x, vec(ROW_LN1_G, E), vec(ROW_LN1_B, E))
    h = _ln(h, vec(ROW_LNA_G, E), vec(ROW_LNA_B, E))

    # --- fused QKV in-projection: one (S,E)@(E,3E) MXU matmul (Q pre-scaled)
    w_in_t = p_ref[W_IN_R0:W_IN_R0 + E, :]            # (E, 3E)
    qkv = jnp.dot(h, w_in_t, preferred_element_type=jnp.float32) + vec(ROW_B_IN, 3 * E)

    # --- per-head attention; out-projection accumulated with head-major
    #     sublane row-blocks of w_out.T (no lane slicing of weights, no .T).
    acc = None
    for hd in range(NUM_HEADS):
        lo = hd * HEAD_DIM
        qh = qkv[:, lo:lo + HEAD_DIM]                 # already scaled
        kh = qkv[:, E + lo:E + lo + HEAD_DIM]
        vh = qkv[:, 2 * E + lo:2 * E + lo + HEAD_DIM]
        s = lax.dot_general(qh, kh, (((1,), (1,)), ((), ())),
                            preferred_element_type=jnp.float32)        # (S, S)
        s = s - jnp.max(s, axis=-1, keepdims=True)
        p = jnp.exp(s)
        p = p * pl.reciprocal(jnp.sum(p, axis=-1, keepdims=True), approx=True)
        # TODO(synk): attn_dropout is eval-mode identity (not applied).
        ctx = jnp.dot(p, vh, preferred_element_type=jnp.float32)       # (S, Dh)
        w_out_h = p_ref[WOUT_R0 + lo:WOUT_R0 + lo + HEAD_DIM, 0:E]     # (Dh, E)
        part = jnp.dot(ctx, w_out_h, preferred_element_type=jnp.float32)
        acc = part if acc is None else acc + part

    x1 = x + acc + vec(ROW_B_OUT, E)                  # residual 1 (+ out-proj bias once)

    # --- MLP branch
    h2 = _ln(x1, vec(ROW_LN2_G, E), vec(ROW_LN2_B, E))
    w1_t = p_ref[W1_R0:W1_R0 + E, 0:MLP_DIM]          # (E, M)
    m = jnp.dot(h2, w1_t, preferred_element_type=jnp.float32) + vec(ROW_B1, MLP_DIM)
    m = 0.5 * m * (1.0 + lax.erf(m * (1.0 / math.sqrt(2.0))))          # exact GELU
    w2_t = p_ref[W2_R0:W2_R0 + MLP_DIM, 0:E]          # (M, E)
    y = jnp.dot(m, w2_t, preferred_element_type=jnp.float32) + vec(ROW_B2, E)
    # MLP Dropout layers are eval-mode identity.

    o_ref[...] = x1 + y                               # residual 2, full-view store


def pack_params(p):
    """Host-side: transpose/rescale/concatenate all params into one slab."""
    E, M = EMBED_DIM, MLP_DIM
    scale = 1.0 / math.sqrt(HEAD_DIM)

    w_in = p["w_in"].astype(jnp.float32)              # (3E, E), rows = [q; k; v]
    w_in = w_in.at[:E, :].multiply(scale)             # fold softmax scale into Q
    b_in = p["b_in"].reshape(3 * E).astype(jnp.float32)
    b_in = b_in.at[:E].multiply(scale)

    slab = jnp.zeros((SLAB_ROWS, SLAB_COLS), jnp.float32)
    slab = slab.at[W_IN_R0:W_IN_R0 + E, 0:3 * E].set(w_in.T)
    slab = slab.at[W1_R0:W1_R0 + E, 0:M].set(p["w1"].T)
    slab = slab.at[W2_R0:W2_R0 + M, 0:E].set(p["w2"].T)
    slab = slab.at[WOUT_R0:WOUT_R0 + E, 0:E].set(p["w_out"].T)

    vec_rows = [
        (ROW_LN1_G, p["ln1_g"]), (ROW_LN1_B, p["ln1_b"]),
        (ROW_LNA_G, p["lna_g"]), (ROW_LNA_B, p["lna_b"]),
        (ROW_LN2_G, p["ln2_g"]), (ROW_LN2_B, p["ln2_b"]),
        (ROW_B_IN, b_in), (ROW_B1, p["b1"]),
        (ROW_B_OUT, p["b_out"]), (ROW_B2, p["b2"]),
    ]
    for row, v in vec_rows:
        v = v.reshape(-1).astype(jnp.float32)
        slab = slab.at[row, 0:v.shape[0]].set(v)
    return slab


def transformer_encoder_layer(x, params):
    B, S, E = x.shape
    slab = pack_params(params)
    return pl.pallas_call(
        _encoder_kernel,
        out_shape=jax.ShapeDtypeStruct((B, S, E), jnp.float32),
        grid_spec=pltpu.PrefetchScalarGridSpec(
            num_scalar_prefetch=0,
            grid=(B,),   # "parallel": one batch per TC on v7x; simple 2-step loop on v5e/v6e
            in_specs=[
                pl.BlockSpec((None, S, E), lambda b: (b, 0, 0)),          # batch squeezed
                pl.BlockSpec((SLAB_ROWS, SLAB_COLS), lambda b: (0, 0)),   # resident, 1 DMA
            ],
            out_specs=pl.BlockSpec((None, S, E), lambda b: (b, 0, 0)),
        ),
        compiler_params=pltpu.CompilerParams(
            dimension_semantics=("parallel",)),
    )(x, slab)


def init_params(key, embed_dim, num_heads, mlp_dim):
    ks = jax.random.split(key, 14)

    def nrm(k, shape, scale=0.05):
        return scale * jax.random.normal(k, shape, dtype=jnp.float32)

    return {
        # layernorm1 (encoder layer)
        "ln1_g": 1.0 + nrm(ks[0], (1, embed_dim)),
        "ln1_b": nrm(ks[1], (1, embed_dim)),
        # layernorm inside the attention block
        "lna_g": 1.0 + nrm(ks[2], (1, embed_dim)),
        "lna_b": nrm(ks[3], (1, embed_dim)),
        # MultiheadAttention fused in-proj (3E, E) / (3E,)
        "w_in": nrm(ks[4], (3 * embed_dim, embed_dim)),
        "b_in": nrm(ks[5], (1, 3 * embed_dim)),
        # MultiheadAttention out-proj (E, E) / (E,)
        "w_out": nrm(ks[6], (embed_dim, embed_dim)),
        "b_out": nrm(ks[7], (1, embed_dim)),
        # layernorm2 (encoder layer)
        "ln2_g": 1.0 + nrm(ks[8], (1, embed_dim)),
        "ln2_b": nrm(ks[9], (1, embed_dim)),
        # MLP
        "w1": nrm(ks[10], (mlp_dim, embed_dim)),
        "b1": nrm(ks[11], (1, mlp_dim)),
        "w2": nrm(ks[12], (embed_dim, mlp_dim)),
        "b2": nrm(ks[13], (1, embed_dim)),
    }


def reference(x, p):
    """Pure-JAX reference (mirrors PyTorch eval-mode forward)."""
    def ln(h, g, b):
        mu = h.mean(-1, keepdims=True)
        var = ((h - mu) ** 2).mean(-1, keepdims=True)
        return (h - mu) / jnp.sqrt(var + LN_EPS) * g + b

    B, S, E = x.shape
    h = ln(ln(x, p["ln1_g"], p["ln1_b"]), p["lna_g"], p["lna_b"])
    qkv = h @ p["w_in"].T + p["b_in"]
    q, k, v = jnp.split(qkv, 3, axis=-1)
    q = q.reshape(B, S, NUM_HEADS, HEAD_DIM).transpose(0, 2, 1, 3)
    k = k.reshape(B, S, NUM_HEADS, HEAD_DIM).transpose(0, 2, 1, 3)
    v = v.reshape(B, S, NUM_HEADS, HEAD_DIM).transpose(0, 2, 1, 3)
    s = jnp.einsum("bhqd,bhkd->bhqk", q, k) / math.sqrt(HEAD_DIM)
    pw = jax.nn.softmax(s, axis=-1)
    ctx = jnp.einsum("bhqk,bhkd->bhqd", pw, v).transpose(0, 2, 1, 3).reshape(B, S, E)
    attn = ctx @ p["w_out"].T + p["b_out"]
    x1 = x + attn
    h2 = ln(x1, p["ln2_g"], p["ln2_b"])
    m = h2 @ p["w1"].T + p["b1"]
    m = 0.5 * m * (1.0 + jax.scipy.special.erf(m / math.sqrt(2.0)))
    m = m @ p["w2"].T + p["b2"]
    return x1 + m


if __name__ == "__main__":
    B, S = 2, 8
    key = jax.random.PRNGKey(0)
    kx, kp = jax.random.split(key)
    x = jax.random.normal(kx, (B, S, EMBED_DIM), dtype=jnp.float32)
    params = init_params(kp, EMBED_DIM, NUM_HEADS, MLP_DIM)

    out = transformer_encoder_layer(x, params)
    out = jax.block_until_ready(out)

    ref = jax.block_until_ready(reference(x, params))
    assert out.shape == (B, S, EMBED_DIM)
    # atol slightly relaxed vs 1e-4 to leave headroom for the EUP approximate
    # reciprocal in the softmax denominator; everything else is exact f32.
    assert jnp.allclose(out, ref, rtol=1e-4, atol=2e-4), float(jnp.abs(out - ref).max())

    print("KERNEL_OK")
</pallas_src>

<mosaic_0001>
module attributes {stable_mosaic.version = 11 : i64} {
  func.func @_encoder_kernel(%arg0: i32, %arg1: memref<1x8x32xf32, #tpu.memory_space<vmem>>, %arg2: memref<176x96xf32, #tpu.memory_space<vmem>>, %arg3: memref<1x8x32xf32, #tpu.memory_space<vmem>>) attributes {dimension_semantics = [#tpu.dimension_semantics<parallel>], iteration_bounds = array<i64: 2>, scalar_prefetch = 0 : i64, scratch_operands = 0 : i64, tpu.core_type = #tpu.core_type<tc>, window_params = [{transform_indices = @transform_0, window_bounds = array<i64: 1, 8, 32>}, {pipeline_mode = #tpu.pipeline_mode<synchronous>, transform_indices = @transform_1, window_bounds = array<i64: 176, 96>}, {transform_indices = @transform_2, window_bounds = array<i64: 1, 8, 32>}]} {
    %c0 = arith.constant 0 : index
    %c0_0 = arith.constant 0 : index
    %c0_1 = arith.constant 0 : index
    %0 = vector.load %arg1[%c0, %c0_0, %c0_1] : memref<1x8x32xf32, #tpu.memory_space<vmem>>, vector<1x8x32xf32>
    %1 = vector.shape_cast %0 : vector<1x8x32xf32> to vector<8x32xf32>
    %c160 = arith.constant 160 : index
    %c0_2 = arith.constant 0 : index
    %2 = vector.load %arg2[%c160, %c0_2] : memref<176x96xf32, #tpu.memory_space<vmem>>, vector<1x32xf32>
    %c161 = arith.constant 161 : index
    %c0_3 = arith.constant 0 : index
    %3 = vector.load %arg2[%c161, %c0_3] : memref<176x96xf32, #tpu.memory_space<vmem>>, vector<1x32xf32>
    %cst = arith.constant dense<0.000000e+00> : vector<8xf32>
    %4 = vector.multi_reduction <add>, %1, %cst [1] : vector<8x32xf32> to vector<8xf32>
    %5 = vector.shape_cast %4 : vector<8xf32> to vector<8x1xf32>
    %cst_4 = arith.constant 3.200000e+01 : f32
    %6 = vector.broadcast %cst_4 : f32 to vector<8x1xf32>
    %7 = arith.divf %5, %6 : vector<8x1xf32>
    %8 = vector.broadcast %7 : vector<8x1xf32> to vector<8x32xf32>
    %9 = arith.subf %1, %8 : vector<8x32xf32>
    %10 = arith.mulf %9, %9 : vector<8x32xf32>
    %cst_5 = arith.constant dense<0.000000e+00> : vector<8xf32>
    %11 = vector.multi_reduction <add>, %10, %cst_5 [1] : vector<8x32xf32> to vector<8xf32>
    %12 = vector.shape_cast %11 : vector<8xf32> to vector<8x1xf32>
    %cst_6 = arith.constant 3.200000e+01 : f32
    %13 = vector.broadcast %cst_6 : f32 to vector<8x1xf32>
    %14 = arith.divf %12, %13 : vector<8x1xf32>
    %cst_7 = arith.constant 9.99999974E-6 : f32
    %15 = vector.broadcast %cst_7 : f32 to vector<8x1xf32>
    %16 = arith.addf %14, %15 : vector<8x1xf32>
    %17 = math.rsqrt %16 : vector<8x1xf32>
    %18 = vector.broadcast %17 : vector<8x1xf32> to vector<8x32xf32>
    %19 = arith.mulf %9, %18 : vector<8x32xf32>
    %20 = vector.broadcast %2 : vector<1x32xf32> to vector<8x32xf32>
    %21 = arith.mulf %19, %20 : vector<8x32xf32>
    %22 = vector.broadcast %3 : vector<1x32xf32> to vector<8x32xf32>
    %23 = arith.addf %21, %22 : vector<8x32xf32>
    %c162 = arith.constant 162 : index
    %c0_8 = arith.constant 0 : index
    %24 = vector.load %arg2[%c162, %c0_8] : memref<176x96xf32, #tpu.memory_space<vmem>>, vector<1x32xf32>
    %c163 = arith.constant 163 : index
    %c0_9 = arith.constant 0 : index
    %25 = vector.load %arg2[%c163, %c0_9] : memref<176x96xf32, #tpu.memory_space<vmem>>, vector<1x32xf32>
    %cst_10 = arith.constant dense<0.000000e+00> : vector<8xf32>
    %26 = vector.multi_reduction <add>, %23, %cst_10 [1] : vector<8x32xf32> to vector<8xf32>
    %27 = vector.shape_cast %26 : vector<8xf32> to vector<8x1xf32>
    %cst_11 = arith.constant 3.200000e+01 : f32
    %28 = vector.broadcast %cst_11 : f32 to vector<8x1xf32>
    %29 = arith.divf %27, %28 : vector<8x1xf32>
    %30 = vector.broadcast %29 : vector<8x1xf32> to vector<8x32xf32>
    %31 = arith.subf %23, %30 : vector<8x32xf32>
    %32 = arith.mulf %31, %31 : vector<8x32xf32>
    %cst_12 = arith.constant dense<0.000000e+00> : vector<8xf32>
    %33 = vector.multi_reduction <add>, %32, %cst_12 [1] : vector<8x32xf32> to vector<8xf32>
    %34 = vector.shape_cast %33 : vector<8xf32> to vector<8x1xf32>
    %cst_13 = arith.constant 3.200000e+01 : f32
    %35 = vector.broadcast %cst_13 : f32 to vector<8x1xf32>
    %36 = arith.divf %34, %35 : vector<8x1xf32>
    %cst_14 = arith.constant 9.99999974E-6 : f32
    %37 = vector.broadcast %cst_14 : f32 to vector<8x1xf32>
    %38 = arith.addf %36, %37 : vector<8x1xf32>
    %39 = math.rsqrt %38 : vector<8x1xf32>
    %40 = vector.broadcast %39 : vector<8x1xf32> to vector<8x32xf32>
    %41 = arith.mulf %31, %40 : vector<8x32xf32>
    %42 = vector.broadcast %24 : vector<1x32xf32> to vector<8x32xf32>
    %43 = arith.mulf %41, %42 : vector<8x32xf32>
    %44 = vector.broadcast %25 : vector<1x32xf32> to vector<8x32xf32>
    %45 = arith.addf %43, %44 : vector<8x32xf32>
    %c0_15 = arith.constant 0 : index
    %c0_16 = arith.constant 0 : index
    %46 = vector.load %arg2[%c0_15, %c0_16] : memref<176x96xf32, #tpu.memory_space<vmem>>, vector<32x96xf32>
    %cst_17 = arith.constant dense<0.000000e+00> : vector<8x96xf32>
    %47 = tpu.matmul %45, %46, %cst_17 {dimension_numbers = #tpu.dot_dimension_numbers<[1], [0], [0], [1], [0, 0, 1, 1], [], []>} : vector<8x32xf32>, vector<32x96xf32>, vector<8x96xf32> -> vector<8x96xf32>
    %c166 = arith.constant 166 : index
    %c0_18 = arith.constant 0 : index
    %48 = vector.load %arg2[%c166, %c0_18] : memref<176x96xf32, #tpu.memory_space<vmem>>, vector<1x96xf32>
    %49 = vector.broadcast %48 : vector<1x96xf32> to vector<8x96xf32>
    %50 = arith.addf %47, %49 : vector<8x96xf32>
    %51 = vector.extract_strided_slice %50 {offsets = [0, 0], sizes = [8, 8], strides = [1, 1]} : vector<8x96xf32> to vector<8x8xf32>
    %52 = vector.extract_strided_slice %50 {offsets = [0, 32], sizes = [8, 8], strides = [1, 1]} : vector<8x96xf32> to vector<8x8xf32>
    %53 = vector.extract_strided_slice %50 {offsets = [0, 64], sizes = [8, 8], strides = [1, 1]} : vector<8x96xf32> to vector<8x8xf32>
    %cst_19 = arith.constant dense<0.000000e+00> : vector<8x8xf32>
    %54 = tpu.matmul %51, %52, %cst_19 {dimension_numbers = #tpu.dot_dimension_numbers<[1], [1], [0], [0], [0, 0, 1, 0], [], []>} : vector<8x8xf32>, vector<8x8xf32>, vector<8x8xf32> -> vector<8x8xf32>
    %cst_20 = arith.constant dense<0xFF800000> : vector<8xf32>
    %55 = vector.multi_reduction <maximumf>, %54, %cst_20 [1] : vector<8x8xf32> to vector<8xf32>
    %56 = vector.shape_cast %55 : vector<8xf32> to vector<8x1xf32>
    %57 = vector.broadcast %56 : vector<8x1xf32> to vector<8x8xf32>
    %58 = arith.subf %54, %57 : vector<8x8xf32>
    %59 = math.exp %58 : vector<8x8xf32>
    %cst_21 = arith.constant dense<0.000000e+00> : vector<8xf32>
    %60 = vector.multi_reduction <add>, %59, %cst_21 [1] : vector<8x8xf32> to vector<8xf32>
    %61 = vector.shape_cast %60 : vector<8xf32> to vector<8x1xf32>
    %62 = tpu.reciprocal %61 {approx = true} : vector<8x1xf32> -> vector<8x1xf32>
    %63 = vector.broadcast %62 : vector<8x1xf32> to vector<8x8xf32>
    %64 = arith.mulf %59, %63 : vector<8x8xf32>
    %cst_22 = arith.constant dense<0.000000e+00> : vector<8x8xf32>
    %65 = tpu.matmul %64, %53, %cst_22 {dimension_numbers = #tpu.dot_dimension_numbers<[1], [0], [0], [1], [0, 0, 1, 1], [], []>} : vector<8x8xf32>, vector<8x8xf32>, vector<8x8xf32> -> vector<8x8xf32>
    %c128 = arith.constant 128 : index
    %c0_23 = arith.constant 0 : index
    %66 = vector.load %arg2[%c128, %c0_23] : memref<176x96xf32, #tpu.memory_space<vmem>>, vector<8x32xf32>
    %cst_24 = arith.constant dense<0.000000e+00> : vector<8x32xf32>
    %67 = tpu.matmul %65, %66, %cst_24 {dimension_numbers = #tpu.dot_dimension_numbers<[1], [0], [0], [1], [0, 0, 1, 1], [], []>} : vector<8x8xf32>, vector<8x32xf32>, vector<8x32xf32> -> vector<8x32xf32>
    %68 = vector.extract_strided_slice %50 {offsets = [0, 8], sizes = [8, 8], strides = [1, 1]} : vector<8x96xf32> to vector<8x8xf32>
    %69 = vector.extract_strided_slice %50 {offsets = [0, 40], sizes = [8, 8], strides = [1, 1]} : vector<8x96xf32> to vector<8x8xf32>
    %70 = vector.extract_strided_slice %50 {offsets = [0, 72], sizes = [8, 8], strides = [1, 1]} : vector<8x96xf32> to vector<8x8xf32>
    %cst_25 = arith.constant dense<0.000000e+00> : vector<8x8xf32>
    %71 = tpu.matmul %68, %69, %cst_25 {dimension_numbers = #tpu.dot_dimension_numbers<[1], [1], [0], [0], [0, 0, 1, 0], [], []>} : vector<8x8xf32>, vector<8x8xf32>, vector<8x8xf32> -> vector<8x8xf32>
    %cst_26 = arith.constant dense<0xFF800000> : vector<8xf32>
    %72 = vector.multi_reduction <maximumf>, %71, %cst_26 [1] : vector<8x8xf32> to vector<8xf32>
    %73 = vector.shape_cast %72 : vector<8xf32> to vector<8x1xf32>
    %74 = vector.broadcast %73 : vector<8x1xf32> to vector<8x8xf32>
    %75 = arith.subf %71, %74 : vector<8x8xf32>
    %76 = math.exp %75 : vector<8x8xf32>
    %cst_27 = arith.constant dense<0.000000e+00> : vector<8xf32>
    %77 = vector.multi_reduction <add>, %76, %cst_27 [1] : vector<8x8xf32> to vector<8xf32>
    %78 = vector.shape_cast %77 : vector<8xf32> to vector<8x1xf32>
    %79 = tpu.reciprocal %78 {approx = true} : vector<8x1xf32> -> vector<8x1xf32>
    %80 = vector.broadcast %79 : vector<8x1xf32> to vector<8x8xf32>
    %81 = arith.mulf %76, %80 : vector<8x8xf32>
    %cst_28 = arith.constant dense<0.000000e+00> : vector<8x8xf32>
    %82 = tpu.matmul %81, %70, %cst_28 {dimension_numbers = #tpu.dot_dimension_numbers<[1], [0], [0], [1], [0, 0, 1, 1], [], []>} : vector<8x8xf32>, vector<8x8xf32>, vector<8x8xf32> -> vector<8x8xf32>
    %c136 = arith.constant 136 : index
    %c0_29 = arith.constant 0 : index
    %83 = vector.load %arg2[%c136, %c0_29] : memref<176x96xf32, #tpu.memory_space<vmem>>, vector<8x32xf32>
    %cst_30 = arith.constant dense<0.000000e+00> : vector<8x32xf32>
    %84 = tpu.matmul %82, %83, %cst_30 {dimension_numbers = #tpu.dot_dimension_numbers<[1], [0], [0], [1], [0, 0, 1, 1], [], []>} : vector<8x8xf32>, vector<8x32xf32>, vector<8x32xf32> -> vector<8x32xf32>
    %85 = arith.addf %67, %84 : vector<8x32xf32>
    %86 = vector.extract_strided_slice %50 {offsets = [0, 16], sizes = [8, 8], strides = [1, 1]} : vector<8x96xf32> to vector<8x8xf32>
    %87 = vector.extract_strided_slice %50 {offsets = [0, 48], sizes = [8, 8], strides = [1, 1]} : vector<8x96xf32> to vector<8x8xf32>
    %88 = vector.extract_strided_slice %50 {offsets = [0, 80], sizes = [8, 8], strides = [1, 1]} : vector<8x96xf32> to vector<8x8xf32>
    %cst_31 = arith.constant dense<0.000000e+00> : vector<8x8xf32>
    %89 = tpu.matmul %86, %87, %cst_31 {dimension_numbers = #tpu.dot_dimension_numbers<[1], [1], [0], [0], [0, 0, 1, 0], [], []>} : vector<8x8xf32>, vector<8x8xf32>, vector<8x8xf32> -> vector<8x8xf32>
    %cst_32 = arith.constant dense<0xFF800000> : vector<8xf32>
    %90 = vector.multi_reduction <maximumf>, %89, %cst_32 [1] : vector<8x8xf32> to vector<8xf32>
    %91 = vector.shape_cast %90 : vector<8xf32> to vector<8x1xf32>
    %92 = vector.broadcast %91 : vector<8x1xf32> to vector<8x8xf32>
    %93 = arith.subf %89, %92 : vector<8x8xf32>
    %94 = math.exp %93 : vector<8x8xf32>
    %cst_33 = arith.constant dense<0.000000e+00> : vector<8xf32>
    %95 = vector.multi_reduction <add>, %94, %cst_33 [1] : vector<8x8xf32> to vector<8xf32>
    %96 = vector.shape_cast %95 : vector<8xf32> to vector<8x1xf32>
    %97 = tpu.reciprocal %96 {approx = true} : vector<8x1xf32> -> vector<8x1xf32>
    %98 = vector.broadcast %97 : vector<8x1xf32> to vector<8x8xf32>
    %99 = arith.mulf %94, %98 : vector<8x8xf32>
    %cst_34 = arith.constant dense<0.000000e+00> : vector<8x8xf32>
    %100 = tpu.matmul %99, %88, %cst_34 {dimension_numbers = #tpu.dot_dimension_numbers<[1], [0], [0], [1], [0, 0, 1, 1], [], []>} : vector<8x8xf32>, vector<8x8xf32>, vector<8x8xf32> -> vector<8x8xf32>
    %c144 = arith.constant 144 : index
    %c0_35 = arith.constant 0 : index
    %101 = vector.load %arg2[%c144, %c0_35] : memref<176x96xf32, #tpu.memory_space<vmem>>, vector<8x32xf32>
    %cst_36 = arith.constant dense<0.000000e+00> : vector<8x32xf32>
    %102 = tpu.matmul %100, %101, %cst_36 {dimension_numbers = #tpu.dot_dimension_numbers<[1], [0], [0], [1], [0, 0, 1, 1], [], []>} : vector<8x8xf32>, vector<8x32xf32>, vector<8x32xf32> -> vector<8x32xf32>
    %103 = arith.addf %85, %102 : vector<8x32xf32>
    %104 = vector.extract_strided_slice %50 {offsets = [0, 24], sizes = [8, 8], strides = [1, 1]} : vector<8x96xf32> to vector<8x8xf32>
    %105 = vector.extract_strided_slice %50 {offsets = [0, 56], sizes = [8, 8], strides = [1, 1]} : vector<8x96xf32> to vector<8x8xf32>
    %106 = vector.extract_strided_slice %50 {offsets = [0, 88], sizes = [8, 8], strides = [1, 1]} : vector<8x96xf32> to vector<8x8xf32>
    %cst_37 = arith.constant dense<0.000000e+00> : vector<8x8xf32>
    %107 = tpu.matmul %104, %105, %cst_37 {dimension_numbers = #tpu.dot_dimension_numbers<[1], [1], [0], [0], [0, 0, 1, 0], [], []>} : vector<8x8xf32>, vector<8x8xf32>, vector<8x8xf32> -> vector<8x8xf32>
    %cst_38 = arith.constant dense<0xFF800000> : vector<8xf32>
    %108 = vector.multi_reduction <maximumf>, %107, %cst_38 [1] : vector<8x8xf32> to vector<8xf32>
    %109 = vector.shape_cast %108 : vector<8xf32> to vector<8x1xf32>
    %110 = vector.broadcast %109 : vector<8x1xf32> to vector<8x8xf32>
    %111 = arith.subf %107, %110 : vector<8x8xf32>
    %112 = math.exp %111 : vector<8x8xf32>
    %cst_39 = arith.constant dense<0.000000e+00> : vector<8xf32>
    %113 = vector.multi_reduction <add>, %112, %cst_39 [1] : vector<8x8xf32> to vector<8xf32>
    %114 = vector.shape_cast %113 : vector<8xf32> to vector<8x1xf32>
    %115 = tpu.reciprocal %114 {approx = true} : vector<8x1xf32> -> vector<8x1xf32>
    %116 = vector.broadcast %115 : vector<8x1xf32> to vector<8x8xf32>
    %117 = arith.mulf %112, %116 : vector<8x8xf32>
    %cst_40 = arith.constant dense<0.000000e+00> : vector<8x8xf32>
    %118 = tpu.matmul %117, %106, %cst_40 {dimension_numbers = #tpu.dot_dimension_numbers<[1], [0], [0], [1], [0, 0, 1, 1], [], []>} : vector<8x8xf32>, vector<8x8xf32>, vector<8x8xf32> -> vector<8x8xf32>
    %c152 = arith.constant 152 : index
    %c0_41 = arith.constant 0 : index
    %119 = vector.load %arg2[%c152, %c0_41] : memref<176x96xf32, #tpu.memory_space<vmem>>, vector<8x32xf32>
    %cst_42 = arith.constant dense<0.000000e+00> : vector<8x32xf32>
    %120 = tpu.matmul %118, %119, %cst_42 {dimension_numbers = #tpu.dot_dimension_numbers<[1], [0], [0], [1], [0, 0, 1, 1], [], []>} : vector<8x8xf32>, vector<8x32xf32>, vector<8x32xf32> -> vector<8x32xf32>
    %121 = arith.addf %103, %120 : vector<8x32xf32>
    %122 = arith.addf %1, %121 : vector<8x32xf32>
    %c168 = arith.constant 168 : index
    %c0_43 = arith.constant 0 : index
    %123 = vector.load %arg2[%c168, %c0_43] : memref<176x96xf32, #tpu.memory_space<vmem>>, vector<1x32xf32>
    %124 = vector.broadcast %123 : vector<1x32xf32> to vector<8x32xf32>
    %125 = arith.addf %122, %124 : vector<8x32xf32>
    %c164 = arith.constant 164 : index
    %c0_44 = arith.constant 0 : index
    %126 = vector.load %arg2[%c164, %c0_44] : memref<176x96xf32, #tpu.memory_space<vmem>>, vector<1x32xf32>
    %c165 = arith.constant 165 : index
    %c0_45 = arith.constant 0 : index
    %127 = vector.load %arg2[%c165, %c0_45] : memref<176x96xf32, #tpu.memory_space<vmem>>, vector<1x32xf32>
    %cst_46 = arith.constant dense<0.000000e+00> : vector<8xf32>
    %128 = vector.multi_reduction <add>, %125, %cst_46 [1] : vector<8x32xf32> to vector<8xf32>
    %129 = vector.shape_cast %128 : vector<8xf32> to vector<8x1xf32>
    %cst_47 = arith.constant 3.200000e+01 : f32
    %130 = vector.broadcast %cst_47 : f32 to vector<8x1xf32>
    %131 = arith.divf %129, %130 : vector<8x1xf32>
    %132 = vector.broadcast %131 : vector<8x1xf32> to vector<8x32xf32>
    %133 = arith.subf %125, %132 : vector<8x32xf32>
    %134 = arith.mulf %133, %133 : vector<8x32xf32>
    %cst_48 = arith.constant dense<0.000000e+00> : vector<8xf32>
    %135 = vector.multi_reduction <add>, %134, %cst_48 [1] : vector<8x32xf32> to vector<8xf32>
    %136 = vector.shape_cast %135 : vector<8xf32> to vector<8x1xf32>
    %cst_49 = arith.constant 3.200000e+01 : f32
    %137 = vector.broadcast %cst_49 : f32 to vector<8x1xf32>
    %138 = arith.divf %136, %137 : vector<8x1xf32>
    %cst_50 = arith.constant 9.99999974E-6 : f32
    %139 = vector.broadcast %cst_50 : f32 to vector<8x1xf32>
    %140 = arith.addf %138, %139 : vector<8x1xf32>
    %141 = math.rsqrt %140 : vector<8x1xf32>
    %142 = vector.broadcast %141 : vector<8x1xf32> to vector<8x32xf32>
    %143 = arith.mulf %133, %142 : vector<8x32xf32>
    %144 = vector.broadcast %126 : vector<1x32xf32> to vector<8x32xf32>
    %145 = arith.mulf %143, %144 : vector<8x32xf32>
    %146 = vector.broadcast %127 : vector<1x32xf32> to vector<8x32xf32>
    %147 = arith.addf %145, %146 : vector<8x32xf32>
    %c32 = arith.constant 32 : index
    %c0_51 = arith.constant 0 : index
    %148 = vector.load %arg2[%c32, %c0_51] : memref<176x96xf32, #tpu.memory_space<vmem>>, vector<32x64xf32>
    %cst_52 = arith.constant dense<0.000000e+00> : vector<8x64xf32>
    %149 = tpu.matmul %147, %148, %cst_52 {dimension_numbers = #tpu.dot_dimension_numbers<[1], [0], [0], [1], [0, 0, 1, 1], [], []>} : vector<8x32xf32>, vector<32x64xf32>, vector<8x64xf32> -> vector<8x64xf32>
    %c167 = arith.constant 167 : index
    %c0_53 = arith.constant 0 : index
    %150 = vector.load %arg2[%c167, %c0_53] : memref<176x96xf32, #tpu.memory_space<vmem>>, vector<1x64xf32>
    %151 = vector.broadcast %150 : vector<1x64xf32> to vector<8x64xf32>
    %152 = arith.addf %149, %151 : vector<8x64xf32>
    %cst_54 = arith.constant 5.000000e-01 : f32
    %153 = vector.broadcast %cst_54 : f32 to vector<8x64xf32>
    %154 = arith.mulf %153, %152 : vector<8x64xf32>
    %cst_55 = arith.constant 0.707106769 : f32
    %155 = vector.broadcast %cst_55 : f32 to vector<8x64xf32>
    %156 = arith.mulf %152, %155 : vector<8x64xf32>
    %157 = math.erf %156 : vector<8x64xf32>
    %cst_56 = arith.constant 1.000000e+00 : f32
    %158 = vector.broadcast %cst_56 : f32 to vector<8x64xf32>
    %159 = arith.addf %158, %157 : vector<8x64xf32>
    %160 = arith.mulf %154, %159 : vector<8x64xf32>
    %c64 = arith.constant 64 : index
    %c0_57 = arith.constant 0 : index
    %161 = vector.load %arg2[%c64, %c0_57] : memref<176x96xf32, #tpu.memory_space<vmem>>, vector<64x32xf32>
    %cst_58 = arith.constant dense<0.000000e+00> : vector<8x32xf32>
    %162 = tpu.matmul %160, %161, %cst_58 {dimension_numbers = #tpu.dot_dimension_numbers<[1], [0], [0], [1], [0, 0, 1, 1], [], []>} : vector<8x64xf32>, vector<64x32xf32>, vector<8x32xf32> -> vector<8x32xf32>
    %c169 = arith.constant 169 : index
    %c0_59 = arith.constant 0 : index
    %163 = vector.load %arg2[%c169, %c0_59] : memref<176x96xf32, #tpu.memory_space<vmem>>, vector<1x32xf32>
    %164 = vector.broadcast %163 : vector<1x32xf32> to vector<8x32xf32>
    %165 = arith.addf %162, %164 : vector<8x32xf32>
    %166 = arith.addf %125, %165 : vector<8x32xf32>
    %c0_60 = arith.constant 0 : index
    %c0_61 = arith.constant 0 : index
    %c0_62 = arith.constant 0 : index
    %167 = vector.load %arg3[%c0_60, %c0_61, %c0_62] : memref<1x8x32xf32, #tpu.memory_space<vmem>>, vector<1x8x32xf32>
    %168 = vector.shape_cast %167 : vector<1x8x32xf32> to vector<8x32xf32>
    %169 = vector.shape_cast %166 : vector<8x32xf32> to vector<1x8x32xf32>
    tpu.vector_store %arg3[%c0_60, %c0_61, %c0_62], %169 {strides = array<i32>} : memref<1x8x32xf32, #tpu.memory_space<vmem>>, vector<1x8x32xf32>,
    return
  }
  func.func @transform_0(%arg0: i32) -> (i32, i32, i32) {
    %c0_i32 = arith.constant 0 : i32
    %c0_i32_0 = arith.constant 0 : i32
    %c0_i32_1 = arith.constant 0 : i32
    return %arg0, %c0_i32, %c0_i32_0 : i32, i32, i32
  }
  func.func @transform_1(%arg0: i32) -> (i32, i32) {
    %c0_i32 = arith.constant 0 : i32
    %c0_i32_0 = arith.constant 0 : i32
    %c0_i32_1 = arith.constant 0 : i32
    return %c0_i32, %c0_i32_0 : i32, i32
  }
  func.func @transform_2(%arg0: i32) -> (i32, i32, i32) {
    %c0_i32 = arith.constant 0 : i32
    %c0_i32_0 = arith.constant 0 : i32
    %c0_i32_1 = arith.constant 0 : i32
    return %arg0, %c0_i32, %c0_i32_0 : i32, i32, i32
  }
}

</mosaic_0001>

<llo_original>
// kernel: tpu_custom_call.1
$region0: #{tpu_custom_call.1}
  #allocation0 [shape = 'u32[]', space=smem, size = 0x4, offset = 0x4, fixed_abs, tag = 'smem constant byte address 0x4 - core index']
  #allocation1 [shape = 'u32[144,128]{1,0:T(1,128)}', space=vmem, size = 0x12000, scoped, tag = 'internal scratch']
  %s0 = inlined_call_operand.hbm [shape: f32[2,8,32], index: 0, kind: input, shape index: {}]
  %s1 = inlined_call_operand.hbm [shape: f32[176,96], index: 1, kind: input, shape index: {}]
  %s2 = inlined_call_operand.hbm [shape: f32[2,8,32], index: 2, kind: output, shape index: {}]
  %s3 = sld [smem:[#allocation0]]
  $region49: #{tpu_custom_call.1} parent=0
    _
  %s5 = ssub.s32 1, %s3
  %s6 = scalar_select 0, %s5, %s3
  $region1: #{tpu_custom_call.1} parent=0
    #allocation2 [shape = 'u8[8192]{0}', space=vmem, size = 0x2000, scoped, tag = 'input window, operand 0']
    #allocation3 [shape = 's32[2]{0}', space=sflag, size = 0x8, scoped, tag = 'scoped memory for tpu_custom_call.1']
    #allocation4 [shape = 's32[2]{0}', space=sflag, size = 0x8, scoped, tag = 'scoped memory for tpu_custom_call.1']
    #allocation5 [shape = 'u8[90112]{0}', space=vmem, size = 0x16000, scoped, tag = 'input window, operand 1, single buffered']
    #allocation6 [shape = 's32[1]{0}', space=sflag, size = 0x4, scoped, tag = 'scoped memory for tpu_custom_call.1']
    #allocation7 [shape = 'u8[8192]{0}', space=vmem, size = 0x2000, scoped, tag = 'output window, operand 0']
    %7 = vsyncpa [#allocation3], 0
    %s8 = scalar_lea.sflag [#allocation3], 1
    %9 = vsyncpa %s8, 0
    %10 = vsyncpa [#allocation6], 0
    %11 = vsyncpa [#allocation4], 0
    %s12 = scalar_lea.sflag [#allocation4], 1
    %13 = vsyncpa %s12, 0
    loop: start=0, step=1, limit=4
    $region2: #{tpu_custom_call.1} parent=1 // loop_pre_header
      _
    $region3: #{tpu_custom_call.1} parent=1 // loop_header
      %s15 = sphi 0, %s19
      %p16 = scmp.ge.s32.totalorder %s15, 4
      %s25 = sphi 0, %s27
      %s28 = sphi 0, %s25
      %s29 = sphi 0, %s28
      %s45 = sphi 0, %s29
      %s49 = sphi 0, %s49
      %s51 = sphi 0, %s49
      %s52 = sphi 0, %s51
      %s66 = sphi 0, %s52
      %s72 = sphi 0, %s74
      %s75 = sphi 0, %s72
      %s76 = sphi 0, %s75
      %s92 = sphi 0, %s76
    $region4: #{tpu_custom_call.1} parent=1 // loop_header_branch
      %18 = sbr.rel (%p16) target = $region8
    $region5: #{tpu_custom_call.1} parent=1 // loop_body
      %s20 = ssub.s32 %s15, 1
      %s21 = ssub.s32 %s15, 2
      %s22 = sadd.s32 %s15, 1
      %s23 = ssub.s32 %s15, %s22
      %p24 = scmp.eq.s32.totalorder %s23, 0
      %s26 = sadd.s32 %s25, 1
      %s27 = scalar_select %p24, %s25, %s26
      %p30 = pneg %p24
      %p31 = scmp.eq.s32.totalorder %s15, 1
      %p32 = por %p30, %p31
      %p33 = scmp.ne.s32.totalorder %s25, %s28
      %p34 = scmp.eq.s32.totalorder %s15, 0
      %p35 = por %p33, %p34
      %p36 = scmp.ne.s32.totalorder %s25, %s28
      %p37 = scmp.eq.s32.totalorder %s20, 1
      %p38 = por %p36, %p37
      %p39 = scmp.ne.s32.totalorder %s28, %s29
      %p40 = scmp.eq.s32.totalorder %s20, 0
      %p41 = por %p39, %p40
      %p42 = scmp.ne.s32.totalorder %s28, %s29
      %p43 = scmp.eq.s32.totalorder %s21, 1
      %p44 = por %p42, %p43
      %p46 = scmp.ne.s32.totalorder %s29, %s45
      %p47 = scmp.eq.s32.totalorder %s21, 0
      %p48 = por %p46, %p47
      %s50 = sadd.s32 %s49, 1
      %p53 = scmp.eq.s32.totalorder %s15, 1
      %p54 = scmp.ne.s32.totalorder %s49, %s51
      %p55 = scmp.eq.s32.totalorder %s15, 0
      %p56 = por %p54, %p55
      %p57 = scmp.ne.s32.totalorder %s49, %s51
      %p58 = scmp.eq.s32.totalorder %s20, 1
      %p59 = por %p57, %p58
      %p60 = scmp.ne.s32.totalorder %s51, %s52
      %p61 = scmp.eq.s32.totalorder %s20, 0
      %p62 = por %p60, %p61
      %p63 = scmp.ne.s32.totalorder %s51, %s52
      %p64 = scmp.eq.s32.totalorder %s21, 1
      %p65 = por %p63, %p64
      %p67 = scmp.ne.s32.totalorder %s52, %s66
      %p68 = scmp.eq.s32.totalorder %s21, 0
      %p69 = por %p67, %p68
      %s70 = ssub.s32 %s15, %s22
      %p71 = scmp.eq.s32.totalorder %s70, 0
      %s73 = sadd.s32 %s72, 1
      %s74 = scalar_select %p71, %s72, %s73
      %p77 = pneg %p71
      %p78 = scmp.eq.s32.totalorder %s15, 1
      %p79 = por %p77, %p78
      %p80 = scmp.ne.s32.totalorder %s72, %s75
      %p81 = scmp.eq.s32.totalorder %s15, 0
      %p82 = por %p80, %p81
      %p83 = scmp.ne.s32.totalorder %s72, %s75
      %p84 = scmp.eq.s32.totalorder %s20, 1
      %p85 = por %p83, %p84
      %p86 = scmp.ne.s32.totalorder %s75, %s76
      %p87 = scmp.eq.s32.totalorder %s20, 0
      %p88 = por %p86, %p87
      %p89 = scmp.ne.s32.totalorder %s75, %s76
      %p90 = scmp.eq.s32.totalorder %s21, 1
      %p91 = por %p89, %p90
      %p93 = scmp.ne.s32.totalorder %s76, %s92
      %p94 = scmp.eq.s32.totalorder %s21, 0
      %p95 = por %p93, %p94
      %p96 = scmp.le.s32.totalorder 1, %s15
      %p97 = scmp.lt.s32.totalorder %s15, 3
      %p98 = pnand %p96, %p97
      %p99 = pneg %p98
      // Predicated region
      $region9: #{tpu_custom_call.1} parent=5 // pred_check
        _
      $region10: #{tpu_custom_call.1} parent=5 // pred_check_branch
        %101 = sbr.rel (%p98) target = $region12
      $region11: #{tpu_custom_call.1} parent=5 // pred_region
        %s102 = ssub.s32 %s15, 1
        // Predicated region
        $region13: #{tpu_custom_call.1} parent=11 // pred_check
          %p103 = pneg %p62
        $region14: #{tpu_custom_call.1} parent=11 // pred_check_branch
          %105 = sbr.rel (%p103) target = $region16
        $region15: #{tpu_custom_call.1} parent=11 // pred_region
          %s107 = ssub.s32 2816, 2816
          %108 = vsyncadd [#allocation6], %s107
          %s109 = sshll.u32 [#allocation5], 4
          %s110 = int_to_ptr.vmem [resolvable:$true] %s109
          %115 = dma.hbm_to_vmem [thread:$0]  %s1, 2816, %s110, [#allocation6], 128, 128, 8
        $region16: #{tpu_custom_call.1} parent=11 // pred_fallthru
          _
      $region12: #{tpu_custom_call.1} parent=5 // pred_fallthru
        _
      %p116 = scmp.lt.s32.totalorder %s15, 2
      // Predicated region
      $region17: #{tpu_custom_call.1} parent=5 // pred_check
        %p117 = pneg %p116
      $region18: #{tpu_custom_call.1} parent=5 // pred_check_branch
        %119 = sbr.rel (%p117) target = $region20
      $region19: #{tpu_custom_call.1} parent=5 // pred_region
        // Predicated region
        $region21: #{tpu_custom_call.1} parent=19 // pred_check
          %p120 = pneg %p35
        $region22: #{tpu_custom_call.1} parent=19 // pred_check_branch
          %122 = sbr.rel (%p120) target = $region24
        $region23: #{tpu_custom_call.1} parent=19 // pred_region
          %s123 = sand.u32 %s25, 1
          %s124 = scalar_lea.sflag [#allocation3], %s123
          %s125 = sand.u32 %s25, 1
          %s126 = smul.addr %s125, 8
          %s127 = scalar_lea.vmem [#allocation2], %s126
          %s129 = ssub.s32 128, 128
          %130 = vsyncadd %s124, %s129
          %s131 = smul.addr %s15, 128
          %s132 = scalar_lea.hbm %s0, %s131
          %s134 = sshll.u32 %s127, 4
          %s135 = int_to_ptr.vmem [resolvable:$true] %s134
          %137 = dma.hbm_to_vmem [thread:$0]  %s132, 128, %s135, %s124
        $region24: #{tpu_custom_call.1} parent=19 // pred_fallthru
          _
      $region20: #{tpu_custom_call.1} parent=5 // pred_fallthru
        _
      %p138 = scmp.le.s32.totalorder 1, %s15
      %p139 = scmp.lt.s32.totalorder %s15, 3
      %p140 = pnand %p138, %p139
      %p141 = pneg %p140
      // Predicated region
      $region25: #{tpu_custom_call.1} parent=5 // pred_check
        _
      $region26: #{tpu_custom_call.1} parent=5 // pred_check_branch
        %143 = sbr.rel (%p140) target = $region28
      $region27: #{tpu_custom_call.1} parent=5 // pred_region
        %s144 = ssub.s32 %s15, 1
        %s145 = sand.u32 %s28, 1
        %s146 = scalar_lea.sflag [#allocation3], %s145
        %s147 = sand.u32 %s28, 1
        %s148 = smul.addr %s147, 8
        %s149 = scalar_lea.vmem [#allocation2], %s148
        // Predicated region
        $region29: #{tpu_custom_call.1} parent=27 // pred_check
          %p150 = pneg %p41
        $region30: #{tpu_custom_call.1} parent=27 // pred_check_branch
          %152 = sbr.rel (%p150) target = $region32
        $region31: #{tpu_custom_call.1} parent=27 // pred_region
          %153 = dma.done %s146, 128
        $region32: #{tpu_custom_call.1} parent=27 // pred_fallthru
          _
        // Predicated region
        $region33: #{tpu_custom_call.1} parent=27 // pred_check
          %p154 = pneg %p62
        $region34: #{tpu_custom_call.1} parent=27 // pred_check_branch
          %156 = sbr.rel (%p154) target = $region36
        $region35: #{tpu_custom_call.1} parent=27 // pred_region
          %157 = dma.done [#allocation6], 2816
        $region36: #{tpu_custom_call.1} parent=27 // pred_fallthru
          _
        %s158 = sand.u32 %s28, 1
        %s159 = scalar_lea.sflag [#allocation3], %s158
        %s160 = sand.u32 %s28, 1
        %s161 = smul.addr %s160, 8
        %s162 = scalar_lea.vmem [#allocation2], %s161
        %p163 = pneg %p41
        %p164 = pneg %p38
        %p165 = pneg %p62
        %p166 = pneg %p59
        %p167 = pneg %p88
        %p168 = pneg %p85
        %s169 = sand.u32 %s75, 1
        %s170 = scalar_lea.sflag [#allocation4], %s169
        %s171 = sand.u32 %s75, 1
        %s172 = smul.addr %s171, 8
        %s173 = scalar_lea.vmem [#allocation7], %s172
        %v174 = vld [vmem:[%s149] sm:$0xff]
        %v175 = vld [vmem:[#allocation5 + $0xa0] sm:$0x1]
        %v176 = vld [vmem:[#allocation5 + $0xa1] sm:$0x1]
        %vm177 = vcmask 261120
        %v178 = vsel %vm177, %v174, 0.0
        %179 = vadd.xlane.f32.xlu0 %v178
        %v180 = vpop.xlane.xlu0 %179
        %v181 = vrcp.pop 32.0
        %v182 = vmul.f32 %v180, %v181
        %v183 = vsub.f32 %v174, %v182
        %v184 = vmul.f32 %v183, %v183
        %v185 = vsel %vm177, %v184, 0.0
        %186 = vadd.xlane.f32.xlu0 %v185
        %v187 = vpop.xlane.xlu0 %186
        %v188 = vmul.f32 %v187, %v181
        %v189 = vadd.f32 %v188, 1e-05
        %v190 = vrsqrt.pop %v189
        %v191 = vmul.f32 %v183, %v190
        %v192 = vlaneseq
        %v193 = vshrl.u32 %v192, 7
        %v194 = vsub.s32 0, %v193
        %v195 = vrot.slane %v175, %v194
        %v196 = vmul.f32 %v191, %v195
        %v197 = vlaneseq
        %v198 = vshrl.u32 %v197, 7
        %v199 = vsub.s32 0, %v198
        %v200 = vrot.slane %v176, %v199
        %v201 = vadd.f32 %v196, %v200
        %v202 = vld [vmem:[#allocation5 + $0xa2] sm:$0x1]
        %v203 = vld [vmem:[#allocation5 + $0xa3] sm:$0x1]
        %v204 = vsel %vm177, %v201, 0.0
        %205 = vadd.xlane.f32.xlu0 %v204
        %v206 = vpop.xlane.xlu0 %205
        %v207 = vmul.f32 %v206, %v181
        %v208 = vsub.f32 %v201, %v207
        %v209 = vmul.f32 %v208, %v208
        %v210 = vsel %vm177, %v209, 0.0
        %211 = vadd.xlane.f32.xlu0 %v210
        %v212 = vpop.xlane.xlu0 %211
        %v213 = vmul.f32 %v212, %v181
        %v214 = vadd.f32 %v213, 1e-05
        %v215 = vrsqrt.pop %v214
        %v216 = vmul.f32 %v208, %v215
        %v217 = vlaneseq
        %v218 = vshrl.u32 %v217, 7
        %v219 = vsub.s32 0, %v218
        %v220 = vrot.slane %v202, %v219
        %v221 = vmul.f32 %v216, %v220
        %v222 = vlaneseq
        %v223 = vshrl.u32 %v222, 7
        %v224 = vsub.s32 0, %v223
        %v225 = vrot.slane %v203, %v224
        %v226 = vadd.f32 %v221, %v225
        %v227 = vld [vmem:[#allocation5] sm:$0xff]
        %v228 = vld [vmem:[#allocation5 + $0x8] sm:$0xff]
        %v229 = vld [vmem:[#allocation5 + $0x10] sm:$0xff]
        %v230 = vld [vmem:[#allocation5 + $0x18] sm:$0xff]
        %v231 = vld [vmem:[#allocation5 + $0xa6] sm:$0x1]
        %v232 = vlaneseq
        %v233 = vshrl.u32 %v232, 7
        %v234 = vsub.s32 0, %v233
        %v235 = vrot.slane %v231, %v234
        %v237 = vsel %vm177, %v226, 0
        %239 = vmatprep.subr.mxu0 0.0
        %240 = vmatpush1.msra.mxu0 %v227
        %241 = vmatprep.subr.mxu0 0.0
        %242 = vmatpush1.msra.mxu0 %v228
        %243 = vmatprep.subr.mxu0 0.0
        %244 = vmatpush1.msra.mxu0 %v229
        %245 = vmatprep.subr.mxu0 0.0
        %246 = vmatpush1.msra.mxu0 %v230
        %247 = vmatprep.subr.mxu0 0.0
        %248 = vmatpush1.msra.mxu0 0.0
        %249 = vmatprep.subr.mxu0 0.0
        %250 = vmatpush1.msra.mxu0 0.0
        %251 = vmatprep.subr.mxu0 0.0
        %252 = vmatpush1.msra.mxu0 0.0
        %253 = vmatprep.subr.mxu0 0.0
        %254 = vmatpush1.msra.mxu0 0.0
        %255 = vmatprep.subr.mxu0 0.0
        %256 = vmatpush1.msra.mxu0 0.0
        %257 = vmatprep.subr.mxu0 0.0
        %258 = vmatpush1.msra.mxu0 0.0
        %259 = vmatprep.subr.mxu0 0.0
        %260 = vmatpush1.msra.mxu0 0.0
        %261 = vmatprep.subr.mxu0 0.0
        %262 = vmatpush1.msra.mxu0 0.0
        %263 = vmatprep.subr.mxu0 0.0
        %264 = vmatpush1.msra.mxu0 0.0
        %265 = vmatprep.subr.mxu0 0.0
        %266 = vmatpush1.msra.mxu0 0.0
        %267 = vmatprep.subr.mxu0 0.0
        %268 = vmatpush1.msra.mxu0 0.0
        %269 = vmatprep.subr.mxu0 0.0
        %270 = vmatpush1.msra.mxu0 0.0
        %271 = vmatprep.subr.mxu0 0.0
        %272 = vmatpush1.msra.mxu0 0.0
        %273 = vmatprep.subr.mxu0 0.0
        %274 = vmatpush1.msra.mxu0 0.0
        %275 = vmatprep.subr.mxu0 0.0
        %276 = vmatpush1.msra.mxu0 0.0
        %277 = vmatprep.subr.mxu0 0.0
        %278 = vmatpush1.msra.mxu0 0.0
        %279 = vmatprep.subr.mxu0 0.0
        %280 = vmatpush1.msra.mxu0 0.0
        %281 = vmatprep.subr.mxu0 0.0
        %282 = vmatpush1.msra.mxu0 0.0
        %283 = vmatprep.subr.mxu0 0.0
        %284 = vmatpush1.msra.mxu0 0.0
        %285 = vmatprep.subr.mxu0 0.0
        %286 = vmatpush1.msra.mxu0 0.0
        %287 = vmatprep.subr.mxu0 0.0
        %288 = vmatpush1.msra.mxu0 0.0
        %289 = vmatprep.subr.mxu0 0.0
        %290 = vmatpush1.msra.mxu0 0.0
        %291 = vmatprep.subr.mxu0 0.0
        %292 = vmatpush1.msra.mxu0 0.0
        %293 = vmatprep.subr.mxu0 0.0
        %294 = vmatpush1.msra.mxu0 0.0
        %295 = vmatprep.subr.mxu0 0.0
        %296 = vmatpush1.msra.mxu0 0.0
        %297 = vmatprep.subr.mxu0 0.0
        %298 = vmatpush1.msra.mxu0 0.0
        %299 = vmatprep.subr.mxu0 0.0
        %300 = vmatpush1.msra.mxu0 0.0
        %301 = vmatprep.subr.mxu0 0.0
        %302 = vmatpush1.msra.mxu0 0.0
        %303 = vmatprep.mubr.f32.mxu0 0.0
        %304 = vmatmul.mubr.f32.gmra.mrb[0].mxu0 %v237
        %v305 = vpop.f32.mrb[0].mxu0
        %v306 = vadd.f32 %v235, %v305
        %v307 = vpop.f32.mrb[0].mxu0
        %308 = vdwg.mxu0
        %310 = vrot.lane.b32.xlu0 %v306, 96
        %v311 = vpop.permute.xlu0 %310
        %vm312 = vcmask 64512
        %v313 = vsel %vm312, %v306, 0
        %v315 = vsel %vm312, %v311, 0
        %317 = vmatprep.subr.mxu0 0.0
        %318 = vmatpush1.xpose.msra.mxu0 %v315
        %319 = vmatprep.subr.mxu0 0.0
        %320 = vmatpush1.xpose.msra.mxu0 0.0
        %321 = vmatprep.subr.mxu0 0.0
        %322 = vmatpush1.xpose.msra.mxu0 0.0
        %323 = vmatprep.subr.mxu0 0.0
        %324 = vmatpush1.xpose.msra.mxu0 0.0
        %325 = vmatprep.subr.mxu0 0.0
        %326 = vmatpush1.xpose.msra.mxu0 0.0
        %327 = vmatprep.subr.mxu0 0.0
        %328 = vmatpush1.xpose.msra.mxu0 0.0
        %329 = vmatprep.subr.mxu0 0.0
        %330 = vmatpush1.xpose.msra.mxu0 0.0
        %331 = vmatprep.subr.mxu0 0.0
        %332 = vmatpush1.xpose.msra.mxu0 0.0
        %333 = vmatprep.subr.mxu0 0.0
        %334 = vmatpush1.xpose.msra.mxu0 0.0
        %335 = vmatprep.subr.mxu0 0.0
        %336 = vmatpush1.xpose.msra.mxu0 0.0
        %337 = vmatprep.subr.mxu0 0.0
        %338 = vmatpush1.xpose.msra.mxu0 0.0
        %339 = vmatprep.subr.mxu0 0.0
        %340 = vmatpush1.xpose.msra.mxu0 0.0
        %341 = vmatprep.subr.mxu0 0.0
        %342 = vmatpush1.xpose.msra.mxu0 0.0
        %343 = vmatprep.subr.mxu0 0.0
        %344 = vmatpush1.xpose.msra.mxu0 0.0
        %345 = vmatprep.subr.mxu0 0.0
        %346 = vmatpush1.xpose.msra.mxu0 0.0
        %347 = vmatprep.subr.mxu0 0.0
        %348 = vmatpush1.xpose.msra.mxu0 0.0
        %349 = vmatprep.subr.mxu0 0.0
        %350 = vmatpush1.xpose.msra.mxu0 0.0
        %351 = vmatprep.subr.mxu0 0.0
        %352 = vmatpush1.xpose.msra.mxu0 0.0
        %353 = vmatprep.subr.mxu0 0.0
        %354 = vmatpush1.xpose.msra.mxu0 0.0
        %355 = vmatprep.subr.mxu0 0.0
        %356 = vmatpush1.xpose.msra.mxu0 0.0
        %357 = vmatprep.subr.mxu0 0.0
        %358 = vmatpush1.xpose.msra.mxu0 0.0
        %359 = vmatprep.subr.mxu0 0.0
        %360 = vmatpush1.xpose.msra.mxu0 0.0
        %361 = vmatprep.subr.mxu0 0.0
        %362 = vmatpush1.xpose.msra.mxu0 0.0
        %363 = vmatprep.subr.mxu0 0.0
        %364 = vmatpush1.xpose.msra.mxu0 0.0
        %365 = vmatprep.subr.mxu0 0.0
        %366 = vmatpush1.xpose.msra.mxu0 0.0
        %367 = vmatprep.subr.mxu0 0.0
        %368 = vmatpush1.xpose.msra.mxu0 0.0
        %369 = vmatprep.subr.mxu0 0.0
        %370 = vmatpush1.xpose.msra.mxu0 0.0
        %371 = vmatprep.subr.mxu0 0.0
        %372 = vmatpush1.xpose.msra.mxu0 0.0
        %373 = vmatprep.subr.mxu0 0.0
        %374 = vmatpush1.xpose.msra.mxu0 0.0
        %375 = vmatprep.subr.mxu0 0.0
        %376 = vmatpush1.xpose.msra.mxu0 0.0
        %377 = vmatprep.subr.mxu0 0.0
        %378 = vmatpush1.xpose.msra.mxu0 0.0
        %379 = vmatprep.subr.mxu0 0.0
        %380 = vmatpush1.xpose.msra.mxu0 0.0
        %381 = vmatprep.mubr.f32.mxu0 0.0
        %382 = vmatmul.mubr.f32.gmra.mrb[0].mxu0 %v313
        %v383 = vpop.f32.mrb[0].mxu0
        %v384 = vadd.f32 0.0, %v383
        %v385 = vpop.f32.mrb[0].mxu0
        %386 = vdwg.mxu0
        %v387 = vsel %vm312, %v384, -inf
        %388 = vmax.xlane.f32.xlu0 %v387
        %v389 = vpop.xlane.xlu0 %388
        %v390 = vsub.f32 %v384, %v389
        %v391 = vmul.f32 %v390, 1.442695
        %v392 = vpow.pop %v391
        %v393 = vsel %vm312, %v392, 0.0
        %394 = vadd.xlane.f32.xlu0 %v393
        %v395 = vpop.xlane.xlu0 %394
        %v396 = vrcp.pop %v395
        %v397 = vmul.f32 %v392, %v396
        %398 = vrot.lane.b32.xlu0 %v306, 64
        %v399 = vpop.permute.xlu0 %398
        %v402 = vsel %vm312, %v397, 0
        %404 = vmatprep.subr.mxu0 0.0
        %405 = vmatpush1.msra.mxu0 %v399
        %406 = vmatprep.subr.mxu0 0.0
        %407 = vmatpush1.msra.mxu0 0.0
        %408 = vmatprep.subr.mxu0 0.0
        %409 = vmatpush1.msra.mxu0 0.0
        %410 = vmatprep.subr.mxu0 0.0
        %411 = vmatpush1.msra.mxu0 0.0
        %412 = vmatprep.subr.mxu0 0.0
        %413 = vmatpush1.msra.mxu0 0.0
        %414 = vmatprep.subr.mxu0 0.0
        %415 = vmatpush1.msra.mxu0 0.0
        %416 = vmatprep.subr.mxu0 0.0
        %417 = vmatpush1.msra.mxu0 0.0
        %418 = vmatprep.subr.mxu0 0.0
        %419 = vmatpush1.msra.mxu0 0.0
        %420 = vmatprep.subr.mxu0 0.0
        %421 = vmatpush1.msra.mxu0 0.0
        %422 = vmatprep.subr.mxu0 0.0
        %423 = vmatpush1.msra.mxu0 0.0
        %424 = vmatprep.subr.mxu0 0.0
        %425 = vmatpush1.msra.mxu0 0.0
        %426 = vmatprep.subr.mxu0 0.0
        %427 = vmatpush1.msra.mxu0 0.0
        %428 = vmatprep.subr.mxu0 0.0
        %429 = vmatpush1.msra.mxu0 0.0
        %430 = vmatprep.subr.mxu0 0.0
        %431 = vmatpush1.msra.mxu0 0.0
        %432 = vmatprep.subr.mxu0 0.0
        %433 = vmatpush1.msra.mxu0 0.0
        %434 = vmatprep.subr.mxu0 0.0
        %435 = vmatpush1.msra.mxu0 0.0
        %436 = vmatprep.subr.mxu0 0.0
        %437 = vmatpush1.msra.mxu0 0.0
        %438 = vmatprep.subr.mxu0 0.0
        %439 = vmatpush1.msra.mxu0 0.0
        %440 = vmatprep.subr.mxu0 0.0
        %441 = vmatpush1.msra.mxu0 0.0
        %442 = vmatprep.subr.mxu0 0.0
        %443 = vmatpush1.msra.mxu0 0.0
        %444 = vmatprep.subr.mxu0 0.0
        %445 = vmatpush1.msra.mxu0 0.0
        %446 = vmatprep.subr.mxu0 0.0
        %447 = vmatpush1.msra.mxu0 0.0
        %448 = vmatprep.subr.mxu0 0.0
        %449 = vmatpush1.msra.mxu0 0.0
        %450 = vmatprep.subr.mxu0 0.0
        %451 = vmatpush1.msra.mxu0 0.0
        %452 = vmatprep.subr.mxu0 0.0
        %453 = vmatpush1.msra.mxu0 0.0
        %454 = vmatprep.subr.mxu0 0.0
        %455 = vmatpush1.msra.mxu0 0.0
        %456 = vmatprep.subr.mxu0 0.0
        %457 = vmatpush1.msra.mxu0 0.0
        %458 = vmatprep.subr.mxu0 0.0
        %459 = vmatpush1.msra.mxu0 0.0
        %460 = vmatprep.subr.mxu0 0.0
        %461 = vmatpush1.msra.mxu0 0.0
        %462 = vmatprep.subr.mxu0 0.0
        %463 = vmatpush1.msra.mxu0 0.0
        %464 = vmatprep.subr.mxu0 0.0
        %465 = vmatpush1.msra.mxu0 0.0
        %466 = vmatprep.subr.mxu0 0.0
        %467 = vmatpush1.msra.mxu0 0.0
        %468 = vmatprep.mubr.f32.mxu0 0.0
        %469 = vmatmul.mubr.f32.gmra.mrb[0].mxu0 %v402
        %v470 = vpop.f32.mrb[0].mxu0
        %v471 = vadd.f32 0.0, %v470
        %v472 = vpop.f32.mrb[0].mxu0
        %473 = vdwg.mxu0
        %v474 = vld [vmem:[#allocation5 + $0x80] sm:$0xff]
        %475 = vrot.lane.b32.xlu0 %v306, 120
        %v476 = vpop.permute.xlu0 %475
        %477 = vrot.lane.b32.xlu0 %v306, 88
        %v478 = vpop.permute.xlu0 %477
        %v479 = vsel %vm312, %v476, 0
        %v481 = vsel %vm312, %v478, 0
        %483 = vmatprep.subr.mxu0 0.0
        %484 = vmatpush1.xpose.msra.mxu0 %v481
        %485 = vmatprep.subr.mxu0 0.0
        %486 = vmatpush1.xpose.msra.mxu0 0.0
        %487 = vmatprep.subr.mxu0 0.0
        %488 = vmatpush1.xpose.msra.mxu0 0.0
        %489 = vmatprep.subr.mxu0 0.0
        %490 = vmatpush1.xpose.msra.mxu0 0.0
        %491 = vmatprep.subr.mxu0 0.0
        %492 = vmatpush1.xpose.msra.mxu0 0.0
        %493 = vmatprep.subr.mxu0 0.0
        %494 = vmatpush1.xpose.msra.mxu0 0.0
        %495 = vmatprep.subr.mxu0 0.0
        %496 = vmatpush1.xpose.msra.mxu0 0.0
        %497 = vmatprep.subr.mxu0 0.0
        %498 = vmatpush1.xpose.msra.mxu0 0.0
        %499 = vmatprep.subr.mxu0 0.0
        %500 = vmatpush1.xpose.msra.mxu0 0.0
        %501 = vmatprep.subr.mxu0 0.0
        %502 = vmatpush1.xpose.msra.mxu0 0.0
        %503 = vmatprep.subr.mxu0 0.0
        %504 = vmatpush1.xpose.msra.mxu0 0.0
        %505 = vmatprep.subr.mxu0 0.0
        %506 = vmatpush1.xpose.msra.mxu0 0.0
        %507 = vmatprep.subr.mxu0 0.0
        %508 = vmatpush1.xpose.msra.mxu0 0.0
        %509 = vmatprep.subr.mxu0 0.0
        %510 = vmatpush1.xpose.msra.mxu0 0.0
        %511 = vmatprep.subr.mxu0 0.0
        %512 = vmatpush1.xpose.msra.mxu0 0.0
        %513 = vmatprep.subr.mxu0 0.0
        %514 = vmatpush1.xpose.msra.mxu0 0.0
        %515 = vmatprep.subr.mxu0 0.0
        %516 = vmatpush1.xpose.msra.mxu0 0.0
        %517 = vmatprep.subr.mxu0 0.0
        %518 = vmatpush1.xpose.msra.mxu0 0.0
        %519 = vmatprep.subr.mxu0 0.0
        %520 = vmatpush1.xpose.msra.mxu0 0.0
        %521 = vmatprep.subr.mxu0 0.0
        %522 = vmatpush1.xpose.msra.mxu0 0.0
        %523 = vmatprep.subr.mxu0 0.0
        %524 = vmatpush1.xpose.msra.mxu0 0.0
        %525 = vmatprep.subr.mxu0 0.0
        %526 = vmatpush1.xpose.msra.mxu0 0.0
        %527 = vmatprep.subr.mxu0 0.0
        %528 = vmatpush1.xpose.msra.mxu0 0.0
        %529 = vmatprep.subr.mxu0 0.0
        %530 = vmatpush1.xpose.msra.mxu0 0.0
        %531 = vmatprep.subr.mxu0 0.0
        %532 = vmatpush1.xpose.msra.mxu0 0.0
        %533 = vmatprep.subr.mxu0 0.0
        %534 = vmatpush1.xpose.msra.mxu0 0.0
        %535 = vmatprep.subr.mxu0 0.0
        %536 = vmatpush1.xpose.msra.mxu0 0.0
        %537 = vmatprep.subr.mxu0 0.0
        %538 = vmatpush1.xpose.msra.mxu0 0.0
        %539 = vmatprep.subr.mxu0 0.0
        %540 = vmatpush1.xpose.msra.mxu0 0.0
        %541 = vmatprep.subr.mxu0 0.0
        %542 = vmatpush1.xpose.msra.mxu0 0.0
        %543 = vmatprep.subr.mxu0 0.0
        %544 = vmatpush1.xpose.msra.mxu0 0.0
        %545 = vmatprep.subr.mxu0 0.0
        %546 = vmatpush1.xpose.msra.mxu0 0.0
        %547 = vmatprep.mubr.f32.mxu0 0.0
        %548 = vmatmul.mubr.f32.gmra.mrb[0].mxu0 %v479
        %v549 = vpop.f32.mrb[0].mxu0
        %v550 = vadd.f32 0.0, %v549
        %v551 = vpop.f32.mrb[0].mxu0
        %552 = vdwg.mxu0
        %v553 = vsel %vm312, %v550, -inf
        %554 = vmax.xlane.f32.xlu0 %v553
        %v555 = vpop.xlane.xlu0 %554
        %v556 = vsub.f32 %v550, %v555
        %v557 = vmul.f32 %v556, 1.442695
        %v558 = vpow.pop %v557
        %v559 = vsel %vm312, %v558, 0.0
        %560 = vadd.xlane.f32.xlu0 %v559
        %v561 = vpop.xlane.xlu0 %560
        %v562 = vrcp.pop %v561
        %v563 = vmul.f32 %v558, %v562
        %564 = vrot.lane.b32.xlu0 %v306, 56
        %v565 = vpop.permute.xlu0 %564
        %v568 = vsel %vm312, %v563, 0
        %570 = vmatprep.subr.mxu0 0.0
        %571 = vmatpush1.msra.mxu0 %v565
        %572 = vmatprep.subr.mxu0 0.0
        %573 = vmatpush1.msra.mxu0 0.0
        %574 = vmatprep.subr.mxu0 0.0
        %575 = vmatpush1.msra.mxu0 0.0
        %576 = vmatprep.subr.mxu0 0.0
        %577 = vmatpush1.msra.mxu0 0.0
        %578 = vmatprep.subr.mxu0 0.0
        %579 = vmatpush1.msra.mxu0 0.0
        %580 = vmatprep.subr.mxu0 0.0
        %581 = vmatpush1.msra.mxu0 0.0
        %582 = vmatprep.subr.mxu0 0.0
        %583 = vmatpush1.msra.mxu0 0.0
        %584 = vmatprep.subr.mxu0 0.0
        %585 = vmatpush1.msra.mxu0 0.0
        %586 = vmatprep.subr.mxu0 0.0
        %587 = vmatpush1.msra.mxu0 0.0
        %588 = vmatprep.subr.mxu0 0.0
        %589 = vmatpush1.msra.mxu0 0.0
        %590 = vmatprep.subr.mxu0 0.0
        %591 = vmatpush1.msra.mxu0 0.0
        %592 = vmatprep.subr.mxu0 0.0
        %593 = vmatpush1.msra.mxu0 0.0
        %594 = vmatprep.subr.mxu0 0.0
        %595 = vmatpush1.msra.mxu0 0.0
        %596 = vmatprep.subr.mxu0 0.0
        %597 = vmatpush1.msra.mxu0 0.0
        %598 = vmatprep.subr.mxu0 0.0
        %599 = vmatpush1.msra.mxu0 0.0
        %600 = vmatprep.subr.mxu0 0.0
        %601 = vmatpush1.msra.mxu0 0.0
        %602 = vmatprep.subr.mxu0 0.0
        %603 = vmatpush1.msra.mxu0 0.0
        %604 = vmatprep.subr.mxu0 0.0
        %605 = vmatpush1.msra.mxu0 0.0
        %606 = vmatprep.subr.mxu0 0.0
        %607 = vmatpush1.msra.mxu0 0.0
        %608 = vmatprep.subr.mxu0 0.0
        %609 = vmatpush1.msra.mxu0 0.0
        %610 = vmatprep.subr.mxu0 0.0
        %611 = vmatpush1.msra.mxu0 0.0
        %612 = vmatprep.subr.mxu0 0.0
        %613 = vmatpush1.msra.mxu0 0.0
        %614 = vmatprep.subr.mxu0 0.0
        %615 = vmatpush1.msra.mxu0 0.0
        %616 = vmatprep.subr.mxu0 0.0
        %617 = vmatpush1.msra.mxu0 0.0
        %618 = vmatprep.subr.mxu0 0.0
        %619 = vmatpush1.msra.mxu0 0.0
        %620 = vmatprep.subr.mxu0 0.0
        %621 = vmatpush1.msra.mxu0 0.0
        %622 = vmatprep.subr.mxu0 0.0
        %623 = vmatpush1.msra.mxu0 0.0
        %624 = vmatprep.subr.mxu0 0.0
        %625 = vmatpush1.msra.mxu0 0.0
        %626 = vmatprep.subr.mxu0 0.0
        %627 = vmatpush1.msra.mxu0 0.0
        %628 = vmatprep.subr.mxu0 0.0
        %629 = vmatpush1.msra.mxu0 0.0
        %630 = vmatprep.subr.mxu0 0.0
        %631 = vmatpush1.msra.mxu0 0.0
        %632 = vmatprep.subr.mxu0 0.0
        %633 = vmatpush1.msra.mxu0 0.0
        %634 = vmatprep.mubr.f32.mxu0 0.0
        %635 = vmatmul.mubr.f32.gmra.mrb[0].mxu0 %v568
        %v636 = vpop.f32.mrb[0].mxu0
        %v637 = vadd.f32 0.0, %v636
        %v638 = vpop.f32.mrb[0].mxu0
        %639 = vdwg.mxu0
        %v640 = vld [vmem:[#allocation5 + $0x88] sm:$0xff]
        %v642 = vsel %vm312, %v637, 0
        %644 = vmatprep.subr.mxu0 0.0
        %645 = vmatpush1.msra.mxu0 %v640
        %646 = vmatprep.subr.mxu0 0.0
        %647 = vmatpush1.msra.mxu0 0.0
        %648 = vmatprep.subr.mxu0 0.0
        %649 = vmatpush1.msra.mxu0 0.0
        %650 = vmatprep.subr.mxu0 0.0
        %651 = vmatpush1.msra.mxu0 0.0
        %652 = vmatprep.subr.mxu0 0.0
        %653 = vmatpush1.msra.mxu0 0.0
        %654 = vmatprep.subr.mxu0 0.0
        %655 = vmatpush1.msra.mxu0 0.0
        %656 = vmatprep.subr.mxu0 0.0
        %657 = vmatpush1.msra.mxu0 0.0
        %658 = vmatprep.subr.mxu0 0.0
        %659 = vmatpush1.msra.mxu0 0.0
        %660 = vmatprep.subr.mxu0 0.0
        %661 = vmatpush1.msra.mxu0 0.0
        %662 = vmatprep.subr.mxu0 0.0
        %663 = vmatpush1.msra.mxu0 0.0
        %664 = vmatprep.subr.mxu0 0.0
        %665 = vmatpush1.msra.mxu0 0.0
        %666 = vmatprep.subr.mxu0 0.0
        %667 = vmatpush1.msra.mxu0 0.0
        %668 = vmatprep.subr.mxu0 0.0
        %669 = vmatpush1.msra.mxu0 0.0
        %670 = vmatprep.subr.mxu0 0.0
        %671 = vmatpush1.msra.mxu0 0.0
        %672 = vmatprep.subr.mxu0 0.0
        %673 = vmatpush1.msra.mxu0 0.0
        %674 = vmatprep.subr.mxu0 0.0
        %675 = vmatpush1.msra.mxu0 0.0
        %676 = vmatprep.subr.mxu0 0.0
        %677 = vmatpush1.msra.mxu0 0.0
        %678 = vmatprep.subr.mxu0 0.0
        %679 = vmatpush1.msra.mxu0 0.0
        %680 = vmatprep.subr.mxu0 0.0
        %681 = vmatpush1.msra.mxu0 0.0
        %682 = vmatprep.subr.mxu0 0.0
        %683 = vmatpush1.msra.mxu0 0.0
        %684 = vmatprep.subr.mxu0 0.0
        %685 = vmatpush1.msra.mxu0 0.0
        %686 = vmatprep.subr.mxu0 0.0
        %687 = vmatpush1.msra.mxu0 0.0
        %688 = vmatprep.subr.mxu0 0.0
        %689 = vmatpush1.msra.mxu0 0.0
        %690 = vmatprep.subr.mxu0 0.0
        %691 = vmatpush1.msra.mxu0 0.0
        %692 = vmatprep.subr.mxu0 0.0
        %693 = vmatpush1.msra.mxu0 0.0
        %694 = vmatprep.subr.mxu0 0.0
        %695 = vmatpush1.msra.mxu0 0.0
        %696 = vmatprep.subr.mxu0 0.0
        %697 = vmatpush1.msra.mxu0 0.0
        %698 = vmatprep.subr.mxu0 0.0
        %699 = vmatpush1.msra.mxu0 0.0
        %700 = vmatprep.subr.mxu0 0.0
        %701 = vmatpush1.msra.mxu0 0.0
        %702 = vmatprep.subr.mxu0 0.0
        %703 = vmatpush1.msra.mxu0 0.0
        %704 = vmatprep.subr.mxu0 0.0
        %705 = vmatpush1.msra.mxu0 0.0
        %706 = vmatprep.subr.mxu0 0.0
        %707 = vmatpush1.msra.mxu0 0.0
        %708 = vmatprep.mubr.f32.mxu0 0.0
        %709 = vmatmul.mubr.f32.gmra.mrb[0].mxu0 %v642
        %v710 = vpop.f32.mrb[0].mxu0
        %v711 = vadd.f32 0.0, %v710
        %v712 = vpop.f32.mrb[0].mxu0
        %713 = vdwg.mxu0
        %v715 = vsel %vm312, %v471, 0
        %717 = vmatprep.subr.mxu0 0.0
        %718 = vmatpush1.msra.mxu0 %v474
        %719 = vmatprep.subr.mxu0 0.0
        %720 = vmatpush1.msra.mxu0 0.0
        %721 = vmatprep.subr.mxu0 0.0
        %722 = vmatpush1.msra.mxu0 0.0
        %723 = vmatprep.subr.mxu0 0.0
        %724 = vmatpush1.msra.mxu0 0.0
        %725 = vmatprep.subr.mxu0 0.0
        %726 = vmatpush1.msra.mxu0 0.0
        %727 = vmatprep.subr.mxu0 0.0
        %728 = vmatpush1.msra.mxu0 0.0
        %729 = vmatprep.subr.mxu0 0.0
        %730 = vmatpush1.msra.mxu0 0.0
        %731 = vmatprep.subr.mxu0 0.0
        %732 = vmatpush1.msra.mxu0 0.0
        %733 = vmatprep.subr.mxu0 0.0
        %734 = vmatpush1.msra.mxu0 0.0
        %735 = vmatprep.subr.mxu0 0.0
        %736 = vmatpush1.msra.mxu0 0.0
        %737 = vmatprep.subr.mxu0 0.0
        %738 = vmatpush1.msra.mxu0 0.0
        %739 = vmatprep.subr.mxu0 0.0
        %740 = vmatpush1.msra.mxu0 0.0
        %741 = vmatprep.subr.mxu0 0.0
        %742 = vmatpush1.msra.mxu0 0.0
        %743 = vmatprep.subr.mxu0 0.0
        %744 = vmatpush1.msra.mxu0 0.0
        %745 = vmatprep.subr.mxu0 0.0
        %746 = vmatpush1.msra.mxu0 0.0
        %747 = vmatprep.subr.mxu0 0.0
        %748 = vmatpush1.msra.mxu0 0.0
        %749 = vmatprep.subr.mxu0 0.0
        %750 = vmatpush1.msra.mxu0 0.0
        %751 = vmatprep.subr.mxu0 0.0
        %752 = vmatpush1.msra.mxu0 0.0
        %753 = vmatprep.subr.mxu0 0.0
        %754 = vmatpush1.msra.mxu0 0.0
        %755 = vmatprep.subr.mxu0 0.0
        %756 = vmatpush1.msra.mxu0 0.0
        %757 = vmatprep.subr.mxu0 0.0
        %758 = vmatpush1.msra.mxu0 0.0
        %759 = vmatprep.subr.mxu0 0.0
        %760 = vmatpush1.msra.mxu0 0.0
        %761 = vmatprep.subr.mxu0 0.0
        %762 = vmatpush1.msra.mxu0 0.0
        %763 = vmatprep.subr.mxu0 0.0
        %764 = vmatpush1.msra.mxu0 0.0
        %765 = vmatprep.subr.mxu0 0.0
        %766 = vmatpush1.msra.mxu0 0.0
        %767 = vmatprep.subr.mxu0 0.0
        %768 = vmatpush1.msra.mxu0 0.0
        %769 = vmatprep.subr.mxu0 0.0
        %770 = vmatpush1.msra.mxu0 0.0
        %771 = vmatprep.subr.mxu0 0.0
        %772 = vmatpush1.msra.mxu0 0.0
        %773 = vmatprep.subr.mxu0 0.0
        %774 = vmatpush1.msra.mxu0 0.0
        %775 = vmatprep.subr.mxu0 0.0
        %776 = vmatpush1.msra.mxu0 0.0
        %777 = vmatprep.subr.mxu0 0.0
        %778 = vmatpush1.msra.mxu0 0.0
        %779 = vmatprep.subr.mxu0 0.0
        %780 = vmatpush1.msra.mxu0 0.0
        %781 = vmatprep.mubr.f32.mxu0 0.0
        %782 = vmatmul.mubr.f32.gmra.mrb[0].mxu0 %v715
        %v783 = vpop.f32.mrb[0].mxu0
        %v784 = vadd.f32 %v711, %v783
        %v785 = vpop.f32.mrb[0].mxu0
        %786 = vdwg.mxu0
        %787 = vrot.lane.b32.xlu0 %v306, 112
        %v788 = vpop.permute.xlu0 %787
        %789 = vrot.lane.b32.xlu0 %v306, 80
        %v790 = vpop.permute.xlu0 %789
        %v791 = vsel %vm312, %v788, 0
        %v793 = vsel %vm312, %v790, 0
        %795 = vmatprep.subr.mxu0 0.0
        %796 = vmatpush1.xpose.msra.mxu0 %v793
        %797 = vmatprep.subr.mxu0 0.0
        %798 = vmatpush1.xpose.msra.mxu0 0.0
        %799 = vmatprep.subr.mxu0 0.0
        %800 = vmatpush1.xpose.msra.mxu0 0.0
        %801 = vmatprep.subr.mxu0 0.0
        %802 = vmatpush1.xpose.msra.mxu0 0.0
        %803 = vmatprep.subr.mxu0 0.0
        %804 = vmatpush1.xpose.msra.mxu0 0.0
        %805 = vmatprep.subr.mxu0 0.0
        %806 = vmatpush1.xpose.msra.mxu0 0.0
        %807 = vmatprep.subr.mxu0 0.0
        %808 = vmatpush1.xpose.msra.mxu0 0.0
        %809 = vmatprep.subr.mxu0 0.0
        %810 = vmatpush1.xpose.msra.mxu0 0.0
        %811 = vmatprep.subr.mxu0 0.0
        %812 = vmatpush1.xpose.msra.mxu0 0.0
        %813 = vmatprep.subr.mxu0 0.0
        %814 = vmatpush1.xpose.msra.mxu0 0.0
        %815 = vmatprep.subr.mxu0 0.0
        %816 = vmatpush1.xpose.msra.mxu0 0.0
        %817 = vmatprep.subr.mxu0 0.0
        %818 = vmatpush1.xpose.msra.mxu0 0.0
        %819 = vmatprep.subr.mxu0 0.0
        %820 = vmatpush1.xpose.msra.mxu0 0.0
        %821 = vmatprep.subr.mxu0 0.0
        %822 = vmatpush1.xpose.msra.mxu0 0.0
        %823 = vmatprep.subr.mxu0 0.0
        %824 = vmatpush1.xpose.msra.mxu0 0.0
        %825 = vmatprep.subr.mxu0 0.0
        %826 = vmatpush1.xpose.msra.mxu0 0.0
        %827 = vmatprep.subr.mxu0 0.0
        %828 = vmatpush1.xpose.msra.mxu0 0.0
        %829 = vmatprep.subr.mxu0 0.0
        %830 = vmatpush1.xpose.msra.mxu0 0.0
        %831 = vmatprep.subr.mxu0 0.0
        %832 = vmatpush1.xpose.msra.mxu0 0.0
        %833 = vmatprep.subr.mxu0 0.0
        %834 = vmatpush1.xpose.msra.mxu0 0.0
        %835 = vmatprep.subr.mxu0 0.0
        %836 = vmatpush1.xpose.msra.mxu0 0.0
        %837 = vmatprep.subr.mxu0 0.0
        %838 = vmatpush1.xpose.msra.mxu0 0.0
        %839 = vmatprep.subr.mxu0 0.0
        %840 = vmatpush1.xpose.msra.mxu0 0.0
        %841 = vmatprep.subr.mxu0 0.0
        %842 = vmatpush1.xpose.msra.mxu0 0.0
        %843 = vmatprep.subr.mxu0 0.0
        %844 = vmatpush1.xpose.msra.mxu0 0.0
        %845 = vmatprep.subr.mxu0 0.0
        %846 = vmatpush1.xpose.msra.mxu0 0.0
        %847 = vmatprep.subr.mxu0 0.0
        %848 = vmatpush1.xpose.msra.mxu0 0.0
        %849 = vmatprep.subr.mxu0 0.0
        %850 = vmatpush1.xpose.msra.mxu0 0.0
        %851 = vmatprep.subr.mxu0 0.0
        %852 = vmatpush1.xpose.msra.mxu0 0.0
        %853 = vmatprep.subr.mxu0 0.0
        %854 = vmatpush1.xpose.msra.mxu0 0.0
        %855 = vmatprep.subr.mxu0 0.0
        %856 = vmatpush1.xpose.msra.mxu0 0.0
        %857 = vmatprep.subr.mxu0 0.0
        %858 = vmatpush1.xpose.msra.mxu0 0.0
        %859 = vmatprep.mubr.f32.mxu0 0.0
        %860 = vmatmul.mubr.f32.gmra.mrb[0].mxu0 %v791
        %v861 = vpop.f32.mrb[0].mxu0
        %v862 = vadd.f32 0.0, %v861
        %v863 = vpop.f32.mrb[0].mxu0
        %864 = vdwg.mxu0
        %v865 = vsel %vm312, %v862, -inf
        %866 = vmax.xlane.f32.xlu0 %v865
        %v867 = vpop.xlane.xlu0 %866
        %v868 = vsub.f32 %v862, %v867
        %v869 = vmul.f32 %v868, 1.442695
        %v870 = vpow.pop %v869
        %v871 = vsel %vm312, %v870, 0.0
        %872 = vadd.xlane.f32.xlu0 %v871
        %v873 = vpop.xlane.xlu0 %872
        %v874 = vrcp.pop %v873
        %v875 = vmul.f32 %v870, %v874
        %876 = vrot.lane.b32.xlu0 %v306, 48
        %v877 = vpop.permute.xlu0 %876
        %v880 = vsel %vm312, %v875, 0
        %882 = vmatprep.subr.mxu0 0.0
        %883 = vmatpush1.msra.mxu0 %v877
        %884 = vmatprep.subr.mxu0 0.0
        %885 = vmatpush1.msra.mxu0 0.0
        %886 = vmatprep.subr.mxu0 0.0
        %887 = vmatpush1.msra.mxu0 0.0
        %888 = vmatprep.subr.mxu0 0.0
        %889 = vmatpush1.msra.mxu0 0.0
        %890 = vmatprep.subr.mxu0 0.0
        %891 = vmatpush1.msra.mxu0 0.0
        %892 = vmatprep.subr.mxu0 0.0
        %893 = vmatpush1.msra.mxu0 0.0
        %894 = vmatprep.subr.mxu0 0.0
        %895 = vmatpush1.msra.mxu0 0.0
        %896 = vmatprep.subr.mxu0 0.0
        %897 = vmatpush1.msra.mxu0 0.0
        %898 = vmatprep.subr.mxu0 0.0
        %899 = vmatpush1.msra.mxu0 0.0
        %900 = vmatprep.subr.mxu0 0.0
        %901 = vmatpush1.msra.mxu0 0.0
        %902 = vmatprep.subr.mxu0 0.0
        %903 = vmatpush1.msra.mxu0 0.0
        %904 = vmatprep.subr.mxu0 0.0
        %905 = vmatpush1.msra.mxu0 0.0
        %906 = vmatprep.subr.mxu0 0.0
        %907 = vmatpush1.msra.mxu0 0.0
        %908 = vmatprep.subr.mxu0 0.0
        %909 = vmatpush1.msra.mxu0 0.0
        %910 = vmatprep.subr.mxu0 0.0
        %911 = vmatpush1.msra.mxu0 0.0
        %912 = vmatprep.subr.mxu0 0.0
        %913 = vmatpush1.msra.mxu0 0.0
        %914 = vmatprep.subr.mxu0 0.0
        %915 = vmatpush1.msra.mxu0 0.0
        %916 = vmatprep.subr.mxu0 0.0
        %917 = vmatpush1.msra.mxu0 0.0
        %918 = vmatprep.subr.mxu0 0.0
        %919 = vmatpush1.msra.mxu0 0.0
        %920 = vmatprep.subr.mxu0 0.0
        %921 = vmatpush1.msra.mxu0 0.0
        %922 = vmatprep.subr.mxu0 0.0
        %923 = vmatpush1.msra.mxu0 0.0
        %924 = vmatprep.subr.mxu0 0.0
        %925 = vmatpush1.msra.mxu0 0.0
        %926 = vmatprep.subr.mxu0 0.0
        %927 = vmatpush1.msra.mxu0 0.0
        %928 = vmatprep.subr.mxu0 0.0
        %929 = vmatpush1.msra.mxu0 0.0
        %930 = vmatprep.subr.mxu0 0.0
        %931 = vmatpush1.msra.mxu0 0.0
        %932 = vmatprep.subr.mxu0 0.0
        %933 = vmatpush1.msra.mxu0 0.0
        %934 = vmatprep.subr.mxu0 0.0
        %935 = vmatpush1.msra.mxu0 0.0
        %936 = vmatprep.subr.mxu0 0.0
        %937 = vmatpush1.msra.mxu0 0.0
        %938 = vmatprep.subr.mxu0 0.0
        %939 = vmatpush1.msra.mxu0 0.0
        %940 = vmatprep.subr.mxu0 0.0
        %941 = vmatpush1.msra.mxu0 0.0
        %942 = vmatprep.subr.mxu0 0.0
        %943 = vmatpush1.msra.mxu0 0.0
        %944 = vmatprep.subr.mxu0 0.0
        %945 = vmatpush1.msra.mxu0 0.0
        %946 = vmatprep.mubr.f32.mxu0 0.0
        %947 = vmatmul.mubr.f32.gmra.mrb[0].mxu0 %v880
        %v948 = vpop.f32.mrb[0].mxu0
        %v949 = vadd.f32 0.0, %v948
        %v950 = vpop.f32.mrb[0].mxu0
        %951 = vdwg.mxu0
        %v952 = vld [vmem:[#allocation5 + $0x90] sm:$0xff]
        %v954 = vsel %vm312, %v949, 0
        %956 = vmatprep.subr.mxu0 0.0
        %957 = vmatpush1.msra.mxu0 %v952
        %958 = vmatprep.subr.mxu0 0.0
        %959 = vmatpush1.msra.mxu0 0.0
        %960 = vmatprep.subr.mxu0 0.0
        %961 = vmatpush1.msra.mxu0 0.0
        %962 = vmatprep.subr.mxu0 0.0
        %963 = vmatpush1.msra.mxu0 0.0
        %964 = vmatprep.subr.mxu0 0.0
        %965 = vmatpush1.msra.mxu0 0.0
        %966 = vmatprep.subr.mxu0 0.0
        %967 = vmatpush1.msra.mxu0 0.0
        %968 = vmatprep.subr.mxu0 0.0
        %969 = vmatpush1.msra.mxu0 0.0
        %970 = vmatprep.subr.mxu0 0.0
        %971 = vmatpush1.msra.mxu0 0.0
        %972 = vmatprep.subr.mxu0 0.0
        %973 = vmatpush1.msra.mxu0 0.0
        %974 = vmatprep.subr.mxu0 0.0
        %975 = vmatpush1.msra.mxu0 0.0
        %976 = vmatprep.subr.mxu0 0.0
        %977 = vmatpush1.msra.mxu0 0.0
        %978 = vmatprep.subr.mxu0 0.0
        %979 = vmatpush1.msra.mxu0 0.0
        %980 = vmatprep.subr.mxu0 0.0
        %981 = vmatpush1.msra.mxu0 0.0
        %982 = vmatprep.subr.mxu0 0.0
        %983 = vmatpush1.msra.mxu0 0.0
        %984 = vmatprep.subr.mxu0 0.0
        %985 = vmatpush1.msra.mxu0 0.0
        %986 = vmatprep.subr.mxu0 0.0
        %987 = vmatpush1.msra.mxu0 0.0
        %988 = vmatprep.subr.mxu0 0.0
        %989 = vmatpush1.msra.mxu0 0.0
        %990 = vmatprep.subr.mxu0 0.0
        %991 = vmatpush1.msra.mxu0 0.0
        %992 = vmatprep.subr.mxu0 0.0
        %993 = vmatpush1.msra.mxu0 0.0
        %994 = vmatprep.subr.mxu0 0.0
        %995 = vmatpush1.msra.mxu0 0.0
        %996 = vmatprep.subr.mxu0 0.0
        %997 = vmatpush1.msra.mxu0 0.0
        %998 = vmatprep.subr.mxu0 0.0
        %999 = vmatpush1.msra.mxu0 0.0
        %1000 = vmatprep.subr.mxu0 0.0
        %1001 = vmatpush1.msra.mxu0 0.0
        %1002 = vmatprep.subr.mxu0 0.0
        %1003 = vmatpush1.msra.mxu0 0.0
        %1004 = vmatprep.subr.mxu0 0.0
        %1005 = vmatpush1.msra.mxu0 0.0
        %1006 = vmatprep.subr.mxu0 0.0
        %1007 = vmatpush1.msra.mxu0 0.0
        %1008 = vmatprep.subr.mxu0 0.0
        %1009 = vmatpush1.msra.mxu0 0.0
        %1010 = vmatprep.subr.mxu0 0.0
        %1011 = vmatpush1.msra.mxu0 0.0
        %1012 = vmatprep.subr.mxu0 0.0
        %1013 = vmatpush1.msra.mxu0 0.0
        %1014 = vmatprep.subr.mxu0 0.0
        %1015 = vmatpush1.msra.mxu0 0.0
        %1016 = vmatprep.subr.mxu0 0.0
        %1017 = vmatpush1.msra.mxu0 0.0
        %1018 = vmatprep.subr.mxu0 0.0
        %1019 = vmatpush1.msra.mxu0 0.0
        %1020 = vmatprep.mubr.f32.mxu0 0.0
        %1021 = vmatmul.mubr.f32.gmra.mrb[0].mxu0 %v954
        %v1022 = vpop.f32.mrb[0].mxu0
        %v1023 = vadd.f32 0.0, %v1022
        %v1024 = vpop.f32.mrb[0].mxu0
        %1025 = vdwg.mxu0
        %v1026 = vadd.f32 %v784, %v1023
        %1027 = vrot.lane.b32.xlu0 %v306, 104
        %v1028 = vpop.permute.xlu0 %1027
        %1029 = vrot.lane.b32.xlu0 %v306, 72
        %v1030 = vpop.permute.xlu0 %1029
        %v1031 = vsel %vm312, %v1028, 0
        %v1033 = vsel %vm312, %v1030, 0
        %1035 = vmatprep.subr.mxu0 0.0
        %1036 = vmatpush1.xpose.msra.mxu0 %v1033
        %1037 = vmatprep.subr.mxu0 0.0
        %1038 = vmatpush1.xpose.msra.mxu0 0.0
        %1039 = vmatprep.subr.mxu0 0.0
        %1040 = vmatpush1.xpose.msra.mxu0 0.0
        %1041 = vmatprep.subr.mxu0 0.0
        %1042 = vmatpush1.xpose.msra.mxu0 0.0
        %1043 = vmatprep.subr.mxu0 0.0
        %1044 = vmatpush1.xpose.msra.mxu0 0.0
        %1045 = vmatprep.subr.mxu0 0.0
        %1046 = vmatpush1.xpose.msra.mxu0 0.0
        %1047 = vmatprep.subr.mxu0 0.0
        %1048 = vmatpush1.xpose.msra.mxu0 0.0
        %1049 = vmatprep.subr.mxu0 0.0
        %1050 = vmatpush1.xpose.msra.mxu0 0.0
        %1051 = vmatprep.subr.mxu0 0.0
        %1052 = vmatpush1.xpose.msra.mxu0 0.0
        %1053 = vmatprep.subr.mxu0 0.0
        %1054 = vmatpush1.xpose.msra.mxu0 0.0
        %1055 = vmatprep.subr.mxu0 0.0
        %1056 = vmatpush1.xpose.msra.mxu0 0.0
        %1057 = vmatprep.subr.mxu0 0.0
        %1058 = vmatpush1.xpose.msra.mxu0 0.0
        %1059 = vmatprep.subr.mxu0 0.0
        %1060 = vmatpush1.xpose.msra.mxu0 0.0
        %1061 = vmatprep.subr.mxu0 0.0
        %1062 = vmatpush1.xpose.msra.mxu0 0.0
        %1063 = vmatprep.subr.mxu0 0.0
        %1064 = vmatpush1.xpose.msra.mxu0 0.0
        %1065 = vmatprep.subr.mxu0 0.0
        %1066 = vmatpush1.xpose.msra.mxu0 0.0
        %1067 = vmatprep.subr.mxu0 0.0
        %1068 = vmatpush1.xpose.msra.mxu0 0.0
        %1069 = vmatprep.subr.mxu0 0.0
        %1070 = vmatpush1.xpose.msra.mxu0 0.0
        %1071 = vmatprep.subr.mxu0 0.0
        %1072 = vmatpush1.xpose.msra.mxu0 0.0
        %1073 = vmatprep.subr.mxu0 0.0
        %1074 = vmatpush1.xpose.msra.mxu0 0.0
        %1075 = vmatprep.subr.mxu0 0.0
        %1076 = vmatpush1.xpose.msra.mxu0 0.0
        %1077 = vmatprep.subr.mxu0 0.0
        %1078 = vmatpush1.xpose.msra.mxu0 0.0
        %1079 = vmatprep.subr.mxu0 0.0
        %1080 = vmatpush1.xpose.msra.mxu0 0.0
        %1081 = vmatprep.subr.mxu0 0.0
        %1082 = vmatpush1.xpose.msra.mxu0 0.0
        %1083 = vmatprep.subr.mxu0 0.0
        %1084 = vmatpush1.xpose.msra.mxu0 0.0
        %1085 = vmatprep.subr.mxu0 0.0
        %1086 = vmatpush1.xpose.msra.mxu0 0.0
        %1087 = vmatprep.subr.mxu0 0.0
        %1088 = vmatpush1.xpose.msra.mxu0 0.0
        %1089 = vmatprep.subr.mxu0 0.0
        %1090 = vmatpush1.xpose.msra.mxu0 0.0
        %1091 = vmatprep.subr.mxu0 0.0
        %1092 = vmatpush1.xpose.msra.mxu0 0.0
        %1093 = vmatprep.subr.mxu0 0.0
        %1094 = vmatpush1.xpose.msra.mxu0 0.0
        %1095 = vmatprep.subr.mxu0 0.0
        %1096 = vmatpush1.xpose.msra.mxu0 0.0
        %1097 = vmatprep.subr.mxu0 0.0
        %1098 = vmatpush1.xpose.msra.mxu0 0.0
        %1099 = vmatprep.mubr.f32.mxu0 0.0
        %1100 = vmatmul.mubr.f32.gmra.mrb[0].mxu0 %v1031
        %v1101 = vpop.f32.mrb[0].mxu0
        %v1102 = vadd.f32 0.0, %v1101
        %v1103 = vpop.f32.mrb[0].mxu0
        %1104 = vdwg.mxu0
        %v1105 = vsel %vm312, %v1102, -inf
        %1106 = vmax.xlane.f32.xlu0 %v1105
        %v1107 = vpop.xlane.xlu0 %1106
        %v1108 = vsub.f32 %v1102, %v1107
        %v1109 = vmul.f32 %v1108, 1.442695
        %v1110 = vpow.pop %v1109
        %v1111 = vsel %vm312, %v1110, 0.0
        %1112 = vadd.xlane.f32.xlu0 %v1111
        %v1113 = vpop.xlane.xlu0 %1112
        %v1114 = vrcp.pop %v1113
        %v1115 = vmul.f32 %v1110, %v1114
        %1116 = vrot.lane.b32.xlu0 %v306, 40
        %v1117 = vpop.permute.xlu0 %1116
        %v1120 = vsel %vm312, %v1115, 0
        %1122 = vmatprep.subr.mxu0 0.0
        %1123 = vmatpush1.msra.mxu0 %v1117
        %1124 = vmatprep.subr.mxu0 0.0
        %1125 = vmatpush1.msra.mxu0 0.0
        %1126 = vmatprep.subr.mxu0 0.0
        %1127 = vmatpush1.msra.mxu0 0.0
        %1128 = vmatprep.subr.mxu0 0.0
        %1129 = vmatpush1.msra.mxu0 0.0
        %1130 = vmatprep.subr.mxu0 0.0
        %1131 = vmatpush1.msra.mxu0 0.0
        %1132 = vmatprep.subr.mxu0 0.0
        %1133 = vmatpush1.msra.mxu0 0.0
        %1134 = vmatprep.subr.mxu0 0.0
        %1135 = vmatpush1.msra.mxu0 0.0
        %1136 = vmatprep.subr.mxu0 0.0
        %1137 = vmatpush1.msra.mxu0 0.0
        %1138 = vmatprep.subr.mxu0 0.0
        %1139 = vmatpush1.msra.mxu0 0.0
        %1140 = vmatprep.subr.mxu0 0.0
        %1141 = vmatpush1.msra.mxu0 0.0
        %1142 = vmatprep.subr.mxu0 0.0
        %1143 = vmatpush1.msra.mxu0 0.0
        %1144 = vmatprep.subr.mxu0 0.0
        %1145 = vmatpush1.msra.mxu0 0.0
        %1146 = vmatprep.subr.mxu0 0.0
        %1147 = vmatpush1.msra.mxu0 0.0
        %1148 = vmatprep.subr.mxu0 0.0
        %1149 = vmatpush1.msra.mxu0 0.0
        %1150 = vmatprep.subr.mxu0 0.0
        %1151 = vmatpush1.msra.mxu0 0.0
        %1152 = vmatprep.subr.mxu0 0.0
        %1153 = vmatpush1.msra.mxu0 0.0
        %1154 = vmatprep.subr.mxu0 0.0
        %1155 = vmatpush1.msra.mxu0 0.0
        %1156 = vmatprep.subr.mxu0 0.0
        %1157 = vmatpush1.msra.mxu0 0.0
        %1158 = vmatprep.subr.mxu0 0.0
        %1159 = vmatpush1.msra.mxu0 0.0
        %1160 = vmatprep.subr.mxu0 0.0
        %1161 = vmatpush1.msra.mxu0 0.0
        %1162 = vmatprep.subr.mxu0 0.0
        %1163 = vmatpush1.msra.mxu0 0.0
        %1164 = vmatprep.subr.mxu0 0.0
        %1165 = vmatpush1.msra.mxu0 0.0
        %1166 = vmatprep.subr.mxu0 0.0
        %1167 = vmatpush1.msra.mxu0 0.0
        %1168 = vmatprep.subr.mxu0 0.0
        %1169 = vmatpush1.msra.mxu0 0.0
        %1170 = vmatprep.subr.mxu0 0.0
        %1171 = vmatpush1.msra.mxu0 0.0
        %1172 = vmatprep.subr.mxu0 0.0
        %1173 = vmatpush1.msra.mxu0 0.0
        %1174 = vmatprep.subr.mxu0 0.0
        %1175 = vmatpush1.msra.mxu0 0.0
        %1176 = vmatprep.subr.mxu0 0.0
        %1177 = vmatpush1.msra.mxu0 0.0
        %1178 = vmatprep.subr.mxu0 0.0
        %1179 = vmatpush1.msra.mxu0 0.0
        %1180 = vmatprep.subr.mxu0 0.0
        %1181 = vmatpush1.msra.mxu0 0.0
        %1182 = vmatprep.subr.mxu0 0.0
        %1183 = vmatpush1.msra.mxu0 0.0
        %1184 = vmatprep.subr.mxu0 0.0
        %1185 = vmatpush1.msra.mxu0 0.0
        %1186 = vmatprep.mubr.f32.mxu0 0.0
        %1187 = vmatmul.mubr.f32.gmra.mrb[0].mxu0 %v1120
        %v1188 = vpop.f32.mrb[0].mxu0
        %v1189 = vadd.f32 0.0, %v1188
        %v1190 = vpop.f32.mrb[0].mxu0
        %1191 = vdwg.mxu0
        %v1192 = vld [vmem:[#allocation5 + $0x98] sm:$0xff]
        %v1194 = vsel %vm312, %v1189, 0
        %1196 = vmatprep.subr.mxu0 0.0
        %1197 = vmatpush1.msra.mxu0 %v1192
        %1198 = vmatprep.subr.mxu0 0.0
        %1199 = vmatpush1.msra.mxu0 0.0
        %1200 = vmatprep.subr.mxu0 0.0
        %1201 = vmatpush1.msra.mxu0 0.0
        %1202 = vmatprep.subr.mxu0 0.0
        %1203 = vmatpush1.msra.mxu0 0.0
        %1204 = vmatprep.subr.mxu0 0.0
        %1205 = vmatpush1.msra.mxu0 0.0
        %1206 = vmatprep.subr.mxu0 0.0
        %1207 = vmatpush1.msra.mxu0 0.0
        %1208 = vmatprep.subr.mxu0 0.0
        %1209 = vmatpush1.msra.mxu0 0.0
        %1210 = vmatprep.subr.mxu0 0.0
        %1211 = vmatpush1.msra.mxu0 0.0
        %1212 = vmatprep.subr.mxu0 0.0
        %1213 = vmatpush1.msra.mxu0 0.0
        %1214 = vmatprep.subr.mxu0 0.0
        %1215 = vmatpush1.msra.mxu0 0.0
        %1216 = vmatprep.subr.mxu0 0.0
        %1217 = vmatpush1.msra.mxu0 0.0
        %1218 = vmatprep.subr.mxu0 0.0
        %1219 = vmatpush1.msra.mxu0 0.0
        %1220 = vmatprep.subr.mxu0 0.0
        %1221 = vmatpush1.msra.mxu0 0.0
        %1222 = vmatprep.subr.mxu0 0.0
        %1223 = vmatpush1.msra.mxu0 0.0
        %1224 = vmatprep.subr.mxu0 0.0
        %1225 = vmatpush1.msra.mxu0 0.0
        %1226 = vmatprep.subr.mxu0 0.0
        %1227 = vmatpush1.msra.mxu0 0.0
        %1228 = vmatprep.subr.mxu0 0.0
        %1229 = vmatpush1.msra.mxu0 0.0
        %1230 = vmatprep.subr.mxu0 0.0
        %1231 = vmatpush1.msra.mxu0 0.0
        %1232 = vmatprep.subr.mxu0 0.0
        %1233 = vmatpush1.msra.mxu0 0.0
        %1234 = vmatprep.subr.mxu0 0.0
        %1235 = vmatpush1.msra.mxu0 0.0
        %1236 = vmatprep.subr.mxu0 0.0
        %1237 = vmatpush1.msra.mxu0 0.0
        %1238 = vmatprep.subr.mxu0 0.0
        %1239 = vmatpush1.msra.mxu0 0.0
        %1240 = vmatprep.subr.mxu0 0.0
        %1241 = vmatpush1.msra.mxu0 0.0
        %1242 = vmatprep.subr.mxu0 0.0
        %1243 = vmatpush1.msra.mxu0 0.0
        %1244 = vmatprep.subr.mxu0 0.0
        %1245 = vmatpush1.msra.mxu0 0.0
        %1246 = vmatprep.subr.mxu0 0.0
        %1247 = vmatpush1.msra.mxu0 0.0
        %1248 = vmatprep.subr.mxu0 0.0
        %1249 = vmatpush1.msra.mxu0 0.0
        %1250 = vmatprep.subr.mxu0 0.0
        %1251 = vmatpush1.msra.mxu0 0.0
        %1252 = vmatprep.subr.mxu0 0.0
        %1253 = vmatpush1.msra.mxu0 0.0
        %1254 = vmatprep.subr.mxu0 0.0
        %1255 = vmatpush1.msra.mxu0 0.0
        %1256 = vmatprep.subr.mxu0 0.0
        %1257 = vmatpush1.msra.mxu0 0.0
        %1258 = vmatprep.subr.mxu0 0.0
        %1259 = vmatpush1.msra.mxu0 0.0
        %1260 = vmatprep.mubr.f32.mxu0 0.0
        %1261 = vmatmul.mubr.f32.gmra.mrb[0].mxu0 %v1194
        %v1262 = vpop.f32.mrb[0].mxu0
        %v1263 = vadd.f32 0.0, %v1262
        %v1264 = vpop.f32.mrb[0].mxu0
        %1265 = vdwg.mxu0
        %v1266 = vadd.f32 %v1026, %v1263
        %v1267 = vadd.f32 %v174, %v1266
        %v1268 = vld [vmem:[#allocation5 + $0xa8] sm:$0x1]
        %v1269 = vlaneseq
        %v1270 = vshrl.u32 %v1269, 7
        %v1271 = vsub.s32 0, %v1270
        %v1272 = vrot.slane %v1268, %v1271
        %v1273 = vadd.f32 %v1267, %v1272
        %v1274 = vld [vmem:[#allocation5 + $0xa4] sm:$0x1]
        %v1275 = vld [vmem:[#allocation5 + $0xa5] sm:$0x1]
        %v1276 = vsel %vm177, %v1273, 0.0
        %1277 = vadd.xlane.f32.xlu0 %v1276
        %v1278 = vpop.xlane.xlu0 %1277
        %v1279 = vmul.f32 %v1278, %v181
        %v1280 = vsub.f32 %v1273, %v1279
        %v1281 = vmul.f32 %v1280, %v1280
        %v1282 = vsel %vm177, %v1281, 0.0
        %1283 = vadd.xlane.f32.xlu0 %v1282
        %v1284 = vpop.xlane.xlu0 %1283
        %v1285 = vmul.f32 %v1284, %v181
        %v1286 = vadd.f32 %v1285, 1e-05
        %v1287 = vrsqrt.pop %v1286
        %v1288 = vmul.f32 %v1280, %v1287
        %v1289 = vlaneseq
        %v1290 = vshrl.u32 %v1289, 7
        %v1291 = vsub.s32 0, %v1290
        %v1292 = vrot.slane %v1274, %v1291
        %v1293 = vmul.f32 %v1288, %v1292
        %v1294 = vlaneseq
        %v1295 = vshrl.u32 %v1294, 7
        %v1296 = vsub.s32 0, %v1295
        %v1297 = vrot.slane %v1275, %v1296
        %v1298 = vadd.f32 %v1293, %v1297
        %v1299 = vld [vmem:[#allocation5 + $0x20] sm:$0xff]
        %v1300 = vld [vmem:[#allocation5 + $0x28] sm:$0xff]
        %v1301 = vld [vmem:[#allocation5 + $0x30] sm:$0xff]
        %v1302 = vld [vmem:[#allocation5 + $0x38] sm:$0xff]
        %v1303 = vld [vmem:[#allocation5 + $0xa7] sm:$0x1]
        %v1304 = vlaneseq
        %v1305 = vshrl.u32 %v1304, 7
        %v1306 = vsub.s32 0, %v1305
        %v1307 = vrot.slane %v1303, %v1306
        %v1309 = vsel %vm177, %v1298, 0
        %1311 = vmatprep.subr.mxu0 0.0
        %1312 = vmatpush1.msra.mxu0 %v1299
        %1313 = vmatprep.subr.mxu0 0.0
        %1314 = vmatpush1.msra.mxu0 %v1300
        %1315 = vmatprep.subr.mxu0 0.0
        %1316 = vmatpush1.msra.mxu0 %v1301
        %1317 = vmatprep.subr.mxu0 0.0
        %1318 = vmatpush1.msra.mxu0 %v1302
        %1319 = vmatprep.subr.mxu0 0.0
        %1320 = vmatpush1.msra.mxu0 0.0
        %1321 = vmatprep.subr.mxu0 0.0
        %1322 = vmatpush1.msra.mxu0 0.0
        %1323 = vmatprep.subr.mxu0 0.0
        %1324 = vmatpush1.msra.mxu0 0.0
        %1325 = vmatprep.subr.mxu0 0.0
        %1326 = vmatpush1.msra.mxu0 0.0
        %1327 = vmatprep.subr.mxu0 0.0
        %1328 = vmatpush1.msra.mxu0 0.0
        %1329 = vmatprep.subr.mxu0 0.0
        %1330 = vmatpush1.msra.mxu0 0.0
        %1331 = vmatprep.subr.mxu0 0.0
        %1332 = vmatpush1.msra.mxu0 0.0
        %1333 = vmatprep.subr.mxu0 0.0
        %1334 = vmatpush1.msra.mxu0 0.0
        %1335 = vmatprep.subr.mxu0 0.0
        %1336 = vmatpush1.msra.mxu0 0.0
        %1337 = vmatprep.subr.mxu0 0.0
        %1338 = vmatpush1.msra.mxu0 0.0
        %1339 = vmatprep.subr.mxu0 0.0
        %1340 = vmatpush1.msra.mxu0 0.0
        %1341 = vmatprep.subr.mxu0 0.0
        %1342 = vmatpush1.msra.mxu0 0.0
        %1343 = vmatprep.subr.mxu0 0.0
        %1344 = vmatpush1.msra.mxu0 0.0
        %1345 = vmatprep.subr.mxu0 0.0
        %1346 = vmatpush1.msra.mxu0 0.0
        %1347 = vmatprep.subr.mxu0 0.0
        %1348 = vmatpush1.msra.mxu0 0.0
        %1349 = vmatprep.subr.mxu0 0.0
        %1350 = vmatpush1.msra.mxu0 0.0
        %1351 = vmatprep.subr.mxu0 0.0
        %1352 = vmatpush1.msra.mxu0 0.0
        %1353 = vmatprep.subr.mxu0 0.0
        %1354 = vmatpush1.msra.mxu0 0.0
        %1355 = vmatprep.subr.mxu0 0.0
        %1356 = vmatpush1.msra.mxu0 0.0
        %1357 = vmatprep.subr.mxu0 0.0
        %1358 = vmatpush1.msra.mxu0 0.0
        %1359 = vmatprep.subr.mxu0 0.0
        %1360 = vmatpush1.msra.mxu0 0.0
        %1361 = vmatprep.subr.mxu0 0.0
        %1362 = vmatpush1.msra.mxu0 0.0
        %1363 = vmatprep.subr.mxu0 0.0
        %1364 = vmatpush1.msra.mxu0 0.0
        %1365 = vmatprep.subr.mxu0 0.0
        %1366 = vmatpush1.msra.mxu0 0.0
        %1367 = vmatprep.subr.mxu0 0.0
        %1368 = vmatpush1.msra.mxu0 0.0
        %1369 = vmatprep.subr.mxu0 0.0
        %1370 = vmatpush1.msra.mxu0 0.0
        %1371 = vmatprep.subr.mxu0 0.0
        %1372 = vmatpush1.msra.mxu0 0.0
        %1373 = vmatprep.subr.mxu0 0.0
        %1374 = vmatpush1.msra.mxu0 0.0
        %1375 = vmatprep.mubr.f32.mxu0 0.0
        %1376 = vmatmul.mubr.f32.gmra.mrb[0].mxu0 %v1309
        %v1377 = vpop.f32.mrb[0].mxu0
        %v1378 = vadd.f32 %v1307, %v1377
        %v1379 = vpop.f32.mrb[0].mxu0
        %1380 = vdwg.mxu0
        %v1381 = vmul.f32 %v1378, 0.5
        %v1382 = vmul.f32 %v1378, 0.70710677
        %v1383 = verf.f32.pop %v1382
        %v1384 = vadd.f32 %v1383, 1.0
        %v1385 = vmul.f32 %v1381, %v1384
        %v1386 = vld [vmem:[#allocation5 + $0x40] sm:$0xff]
        %v1387 = vld [vmem:[#allocation5 + $0x48] sm:$0xff]
        %v1388 = vld [vmem:[#allocation5 + $0x50] sm:$0xff]
        %v1389 = vld [vmem:[#allocation5 + $0x58] sm:$0xff]
        %v1390 = vld [vmem:[#allocation5 + $0x60] sm:$0xff]
        %v1391 = vld [vmem:[#allocation5 + $0x68] sm:$0xff]
        %v1392 = vld [vmem:[#allocation5 + $0x70] sm:$0xff]
        %v1393 = vld [vmem:[#allocation5 + $0x78] sm:$0xff]
        %v1394 = vld [vmem:[#allocation5 + $0xa9] sm:$0x1]
        %v1395 = vlaneseq
        %v1396 = vshrl.u32 %v1395, 7
        %v1397 = vsub.s32 0, %v1396
        %v1398 = vrot.slane %v1394, %v1397
        %vm1399 = vcmask 523264
        %v1401 = vsel %vm1399, %v1385, 0
        %1403 = vmatprep.subr.mxu0 0.0
        %1404 = vmatpush1.msra.mxu0 %v1386
        %1405 = vmatprep.subr.mxu0 0.0
        %1406 = vmatpush1.msra.mxu0 %v1387
        %1407 = vmatprep.subr.mxu0 0.0
        %1408 = vmatpush1.msra.mxu0 %v1388
        %1409 = vmatprep.subr.mxu0 0.0
        %1410 = vmatpush1.msra.mxu0 %v1389
        %1411 = vmatprep.subr.mxu0 0.0
        %1412 = vmatpush1.msra.mxu0 %v1390
        %1413 = vmatprep.subr.mxu0 0.0
        %1414 = vmatpush1.msra.mxu0 %v1391
        %1415 = vmatprep.subr.mxu0 0.0
        %1416 = vmatpush1.msra.mxu0 %v1392
        %1417 = vmatprep.subr.mxu0 0.0
        %1418 = vmatpush1.msra.mxu0 %v1393
        %1419 = vmatprep.subr.mxu0 0.0
        %1420 = vmatpush1.msra.mxu0 0.0
        %1421 = vmatprep.subr.mxu0 0.0
        %1422 = vmatpush1.msra.mxu0 0.0
        %1423 = vmatprep.subr.mxu0 0.0
        %1424 = vmatpush1.msra.mxu0 0.0
        %1425 = vmatprep.subr.mxu0 0.0
        %1426 = vmatpush1.msra.mxu0 0.0
        %1427 = vmatprep.subr.mxu0 0.0
        %1428 = vmatpush1.msra.mxu0 0.0
        %1429 = vmatprep.subr.mxu0 0.0
        %1430 = vmatpush1.msra.mxu0 0.0
        %1431 = vmatprep.subr.mxu0 0.0
        %1432 = vmatpush1.msra.mxu0 0.0
        %1433 = vmatprep.subr.mxu0 0.0
        %1434 = vmatpush1.msra.mxu0 0.0
        %1435 = vmatprep.subr.mxu0 0.0
        %1436 = vmatpush1.msra.mxu0 0.0
        %1437 = vmatprep.subr.mxu0 0.0
        %1438 = vmatpush1.msra.mxu0 0.0
        %1439 = vmatprep.subr.mxu0 0.0
        %1440 = vmatpush1.msra.mxu0 0.0
        %1441 = vmatprep.subr.mxu0 0.0
        %1442 = vmatpush1.msra.mxu0 0.0
        %1443 = vmatprep.subr.mxu0 0.0
        %1444 = vmatpush1.msra.mxu0 0.0
        %1445 = vmatprep.subr.mxu0 0.0
        %1446 = vmatpush1.msra.mxu0 0.0
        %1447 = vmatprep.subr.mxu0 0.0
        %1448 = vmatpush1.msra.mxu0 0.0
        %1449 = vmatprep.subr.mxu0 0.0
        %1450 = vmatpush1.msra.mxu0 0.0
        %1451 = vmatprep.subr.mxu0 0.0
        %1452 = vmatpush1.msra.mxu0 0.0
        %1453 = vmatprep.subr.mxu0 0.0
        %1454 = vmatpush1.msra.mxu0 0.0
        %1455 = vmatprep.subr.mxu0 0.0
        %1456 = vmatpush1.msra.mxu0 0.0
        %1457 = vmatprep.subr.mxu0 0.0
        %1458 = vmatpush1.msra.mxu0 0.0
        %1459 = vmatprep.subr.mxu0 0.0
        %1460 = vmatpush1.msra.mxu0 0.0
        %1461 = vmatprep.subr.mxu0 0.0
        %1462 = vmatpush1.msra.mxu0 0.0
        %1463 = vmatprep.subr.mxu0 0.0
        %1464 = vmatpush1.msra.mxu0 0.0
        %1465 = vmatprep.subr.mxu0 0.0
        %1466 = vmatpush1.msra.mxu0 0.0
        %1467 = vmatprep.mubr.f32.mxu0 0.0
        %1468 = vmatmul.mubr.f32.gmra.mrb[0].mxu0 %v1401
        %v1469 = vpop.f32.mrb[0].mxu0
        %v1470 = vadd.f32 %v1398, %v1469
        %v1471 = vpop.f32.mrb[0].mxu0
        %1472 = vdwg.mxu0
        %v1473 = vadd.f32 %v1273, %v1470
        %1474 = vst.msk [vmem:[%s173] sm:$0xff] %vm177, %v1473
        %s1475 = sand.u32 %s75, 1
        %s1476 = scalar_lea.sflag [#allocation4], %s1475
        %s1477 = sand.u32 %s75, 1
        %s1478 = smul.addr %s1477, 8
        %s1479 = scalar_lea.vmem [#allocation7], %s1478
        // Predicated region
        $region37: #{tpu_custom_call.1} parent=27 // pred_check
          %p1480 = pneg %p85
        $region38: #{tpu_custom_call.1} parent=27 // pred_check_branch
          %1482 = sbr.rel (%p1480) target = $region40
        $region39: #{tpu_custom_call.1} parent=27 // pred_region
          %s1484 = ssub.s32 128, 128
          %1485 = vsyncadd %s1476, %s1484
          %s1486 = smul.addr %s20, 128
          %s1487 = scalar_lea.hbm %s2, %s1486
          %s1489 = sshll.u32 %s1479, 4
          %s1490 = int_to_ptr.vmem [resolvable:$true] %s1489
          %1492 = dma.vmem_to_hbm [thread:$0]  %s1490, 128, %s1487, %s1476
        $region40: #{tpu_custom_call.1} parent=27 // pred_fallthru
          _
      $region28: #{tpu_custom_call.1} parent=5 // pred_fallthru
        _
      %p1493 = scmp.le.s32.totalorder 2, %s15
      // Predicated region
      $region41: #{tpu_custom_call.1} parent=5 // pred_check
        %p1494 = pneg %p1493
      $region42: #{tpu_custom_call.1} parent=5 // pred_check_branch
        %1496 = sbr.rel (%p1494) target = $region44
      $region43: #{tpu_custom_call.1} parent=5 // pred_region
        %s1497 = ssub.s32 %s15, 2
        // Predicated region
        $region45: #{tpu_custom_call.1} parent=43 // pred_check
          %p1498 = pneg %p91
        $region46: #{tpu_custom_call.1} parent=43 // pred_check_branch
          %1500 = sbr.rel (%p1498) target = $region48
        $region47: #{tpu_custom_call.1} parent=43 // pred_region
          %s1501 = sand.u32 %s76, 1
          %s1502 = scalar_lea.sflag [#allocation4], %s1501
          %s1503 = sand.u32 %s76, 1
          %s1504 = smul.addr %s1503, 8
          %s1505 = scalar_lea.vmem [#allocation7], %s1504
          %1506 = dma.done %s1502, 128
        $region48: #{tpu_custom_call.1} parent=43 // pred_fallthru
          _
      $region44: #{tpu_custom_call.1} parent=5 // pred_fallthru
        _
    $region6: #{tpu_custom_call.1} parent=1 // loop_footer
      %s19 = sadd.s32 1, %s15
    $region7: #{tpu_custom_call.1} parent=1 // loop_footer_branch
      %14 = sbr.rel target = $region3
    $region8: #{tpu_custom_call.1} parent=1 // loop_exit
      _
    %1507 = vsyncpa [#allocation3], 1
    %s1508 = scalar_lea.sflag [#allocation3], 1
    %1509 = vsyncpa %s1508, 1
    %1510 = vsyncpa [#allocation6], 1
    %1511 = vsyncpa [#allocation4], 1
    %s1512 = scalar_lea.sflag [#allocation4], 1
    %1513 = vsyncpa %s1512, 1

</llo_original>
